<compile_context>
chip_gen: v7x
topology: tpu7x:2x2x1
jax: 0.10.0
libtpu: 0.0.40
codegen_flags: <defaults>
</compile_context>

<pallas_src>
import functools

import jax
import jax.numpy as jnp
from jax.experimental import pallas as pl
from jax.experimental.pallas import tpu as pltpu


def mha_kernel(q_ref, k_ref, v_ref, wq_ref, wk_ref, wv_ref, wu_ref, bu_ref,
               o_ref, *, n_heads: int, d_head: int, b_blk: int, seq_len: int):
    H, dh, S = n_heads, d_head, seq_len
    BH = b_blk * H
    bf16, f32 = jnp.bfloat16, jnp.float32

    def head_batch_act(ref):
        # (b_blk, S, D) -> (b_blk*H, S, D).  All heads read the same
        # activations, so a major-dim broadcast (cheap VPU copy) replaces any
        # lane-axis head slicing / relayout.
        x = ref[...].astype(bf16)
        x = jnp.broadcast_to(x[:, None, :, :], (b_blk, H) + x.shape[1:])
        return x.reshape((BH,) + x.shape[2:])

    def head_batch_w(ref):
        # (H, a, b) -> (b_blk*H, a, b): head-major weights from the wrapper.
        w = ref[...].astype(bf16)
        w = jnp.broadcast_to(w[None], (b_blk,) + w.shape)
        return w.reshape((BH,) + w.shape[2:])

    qb = head_batch_act(q_ref)
    kb = head_batch_act(k_ref)
    vb = head_batch_act(v_ref)
    wq = head_batch_w(wq_ref)          # (BH, D, dh)
    wk = head_batch_w(wk_ref)
    wv = head_batch_w(wv_ref)
    wu = head_batch_w(wu_ref)          # (BH, dh, D)

    bmm = functools.partial(jax.lax.dot_general, preferred_element_type=f32)
    dn_rhs_mid = (((2,), (1,)), ((0,), (0,)))     # 'bsk,bkn->bsn'
    dn_last_last = (((2,), (2,)), ((0,), (0,)))   # 'bqd,bkd->bqk'  (no K^T)

    # Per-head projections -- all heads in one batched MXU matmul each.
    Qh = bmm(qb, wq, dimension_numbers=dn_rhs_mid)   # (BH, S, dh) f32
    Kh = bmm(kb, wk, dimension_numbers=dn_rhs_mid)
    Vh = bmm(vb, wv, dimension_numbers=dn_rhs_mid)

    # Scores (bf16 operands, f32 accumulation), scaled by d_head**-0.5.
    scores = bmm(Qh.astype(bf16), Kh.astype(bf16),
                 dimension_numbers=dn_last_last)     # (BH, S, S) f32
    scores = scores * (f32(dh) ** -0.5)

    # Causal mask, built once per grid step (no per-head rebuild).
    row = jax.lax.broadcasted_iota(jnp.int32, (BH, S, S), 1)
    col = jax.lax.broadcasted_iota(jnp.int32, (BH, S, S), 2)
    scores = jnp.where(col <= row, scores, f32(-1e30))

    # Numerically stable softmax; statistics stay f32 (v5e-friendly).
    m = jnp.max(scores, axis=-1, keepdims=True)
    e = jnp.exp(scores - m)
    l = jnp.sum(e, axis=-1, keepdims=True)

    # Unnormalized P @ V, then fold normalization in via an EUP reciprocal.
    pv = bmm(e.astype(bf16), Vh.astype(bf16), dimension_numbers=dn_rhs_mid)
    attn = pv * pl.reciprocal(l, approx=True)        # (BH, S, dh) f32

    # Output projection: per-head (dh -> D) batched matmul, then an add-tree
    # over the head axis (major-dim slices, pure VALU adds -- no relayout;
    # mathematically identical to concat + (D, D) matmul).
    out_h = bmm(attn.astype(bf16), wu, dimension_numbers=dn_rhs_mid)  # (BH,S,D)
    out_h = out_h.reshape((b_blk, H) + out_h.shape[1:])
    out = out_h[:, 0]
    for hh in range(1, H):
        out = out + out_h[:, hh]

    out = out + bu_ref[...]                          # (b_blk, S, D) + (1, D)
    o_ref[...] = out.astype(o_ref.dtype)


def multi_head_attention(q, k, v, params, *, n_heads: int, b_blk=None):
    B, S, D = q.shape
    d_head = D // n_heads
    wq, wk, wv, wu, bu = params  # (D,D),(D,D),(D,D),(D,D),(1,D)

    if b_blk is None:
        # Keep >=2 "parallel" grid steps (v7x has 2 TensorCores) while making
        # each step's batch block as large as possible.
        b_blk = max(1, B // 2)
    while B % b_blk:
        b_blk -= 1
    nb = B // b_blk

    bf16 = jnp.bfloat16
    # Head-major weight layout, computed once OUTSIDE the kernel (plain XLA):
    #   W_q/W_k/W_v: (D, D) -> (H, D, d_head)  (head h = columns h*dh:(h+1)*dh)
    #   U:           (D, D) -> (H, d_head, D)  (head h = rows    h*dh:(h+1)*dh)
    # bf16 weights/activations halve HBM->VMEM DMA bytes and feed the MXU at
    # native rate on v5e/v6e/v7x; accumulation stays f32 inside the kernel.
    def split_qkv(w):
        return w.reshape(D, n_heads, d_head).transpose(1, 0, 2).astype(bf16)

    wq_h, wk_h, wv_h = split_qkv(wq), split_qkv(wk), split_qkv(wv)
    wu_h = wu.reshape(n_heads, d_head, D).astype(bf16)

    kernel = functools.partial(mha_kernel, n_heads=n_heads, d_head=d_head,
                               b_blk=b_blk, seq_len=S)

    seq_spec = pl.BlockSpec((b_blk, S, D), lambda b: (b, 0, 0))
    wqkv_spec = pl.BlockSpec((n_heads, D, d_head), lambda b: (0, 0, 0))
    wu_spec = pl.BlockSpec((n_heads, d_head, D), lambda b: (0, 0, 0))
    bu_spec = pl.BlockSpec((1, D), lambda b: (0, 0))

    return pl.pallas_call(
        kernel,
        out_shape=jax.ShapeDtypeStruct((B, S, D), q.dtype),
        grid_spec=pltpu.PrefetchScalarGridSpec(
            num_scalar_prefetch=0,
            grid=(nb,),
            in_specs=[seq_spec, seq_spec, seq_spec,
                      wqkv_spec, wqkv_spec, wqkv_spec, wu_spec, bu_spec],
            out_specs=seq_spec,
        ),
        compiler_params=pltpu.CompilerParams(
            dimension_semantics=("parallel",)),
    )(q.astype(bf16), k.astype(bf16), v.astype(bf16),
      wq_h, wk_h, wv_h, wu_h, bu)


def reference_mha(q, k, v, params, *, n_heads: int):
    """Pure-JAX f32 reference matching the PyTorch forward (eval mode)."""
    wq, wk, wv, wu, bu = params
    B, S, D = q.shape
    d_head = D // n_heads
    Q = q @ wq
    K = k @ wk
    V = v @ wv
    mask = jnp.tril(jnp.ones((S, S), dtype=bool))
    outs = []
    for h in range(n_heads):
        qh = Q[..., h * d_head:(h + 1) * d_head]
        kh = K[..., h * d_head:(h + 1) * d_head]
        vh = V[..., h * d_head:(h + 1) * d_head]
        s = jnp.einsum("bqd,bkd->bqk", qh, kh) * (d_head ** -0.5)
        s = jnp.where(mask, s, -jnp.inf)
        p = jax.nn.softmax(s, axis=-1)
        outs.append(jnp.einsum("bqk,bkd->bqd", p, vh))
    concat = jnp.concatenate(outs, axis=-1)
    return concat @ wu + bu[0]


if __name__ == "__main__":
    B, S, d_model, n_heads = 2, 8, 32, 4
    key = jax.random.PRNGKey(0)
    kq, kk, kv, k1, k2, k3, k4, k5 = jax.random.split(key, 8)

    q = jax.random.normal(kq, (B, S, d_model), dtype=jnp.float32)
    k = jax.random.normal(kk, (B, S, d_model), dtype=jnp.float32)
    v = jax.random.normal(kv, (B, S, d_model), dtype=jnp.float32)

    # Deterministic parameter init (shapes follow the PyTorch module):
    # per-head W_q/W_k/W_v (d_model -> d_head, no bias) concatenated over heads
    # into (d_model, d_model); U is (d_model -> d_model) with bias.
    scale = 0.1
    wq = scale * jax.random.normal(k1, (d_model, d_model), dtype=jnp.float32)
    wk_ = scale * jax.random.normal(k2, (d_model, d_model), dtype=jnp.float32)
    wv_ = scale * jax.random.normal(k3, (d_model, d_model), dtype=jnp.float32)
    wu = scale * jax.random.normal(k4, (d_model, d_model), dtype=jnp.float32)
    bu = scale * jax.random.normal(k5, (1, d_model), dtype=jnp.float32)
    params = (wq, wk_, wv_, wu, bu)

    out = multi_head_attention(q, k, v, params, n_heads=n_heads)
    out = jax.block_until_ready(out)

    ref = reference_mha(q, k, v, params, n_heads=n_heads)
    assert out.shape == (B, S, d_model)
    # Kernel uses bf16 MXU operands (per perf guidance) vs. a pure-f32
    # reference, so the tolerance is bf16-level.
    err = jnp.max(jnp.abs(out - ref))
    assert jnp.allclose(out, ref, atol=5e-2, rtol=5e-2), (
        f"mismatch vs reference: max abs err {err:.4f}")

    print("KERNEL_OK")
</pallas_src>

<mosaic_0001>
module attributes {stable_mosaic.version = 11 : i64} {
  func.func @mha_kernel(%arg0: i32, %arg1: memref<1x8x32xbf16, #tpu.memory_space<vmem>>, %arg2: memref<1x8x32xbf16, #tpu.memory_space<vmem>>, %arg3: memref<1x8x32xbf16, #tpu.memory_space<vmem>>, %arg4: memref<4x32x8xbf16, #tpu.memory_space<vmem>>, %arg5: memref<4x32x8xbf16, #tpu.memory_space<vmem>>, %arg6: memref<4x32x8xbf16, #tpu.memory_space<vmem>>, %arg7: memref<4x8x32xbf16, #tpu.memory_space<vmem>>, %arg8: memref<1x32xf32, #tpu.memory_space<vmem>>, %arg9: memref<1x8x32xf32, #tpu.memory_space<vmem>>) attributes {dimension_semantics = [#tpu.dimension_semantics<parallel>], iteration_bounds = array<i64: 2>, scalar_prefetch = 0 : i64, scratch_operands = 0 : i64, tpu.core_type = #tpu.core_type<tc>, window_params = [{transform_indices = @transform_0, window_bounds = array<i64: 1, 8, 32>}, {transform_indices = @transform_1, window_bounds = array<i64: 1, 8, 32>}, {transform_indices = @transform_2, window_bounds = array<i64: 1, 8, 32>}, {pipeline_mode = #tpu.pipeline_mode<synchronous>, transform_indices = @transform_3, window_bounds = array<i64: 4, 32, 8>}, {pipeline_mode = #tpu.pipeline_mode<synchronous>, transform_indices = @transform_4, window_bounds = array<i64: 4, 32, 8>}, {pipeline_mode = #tpu.pipeline_mode<synchronous>, transform_indices = @transform_5, window_bounds = array<i64: 4, 32, 8>}, {pipeline_mode = #tpu.pipeline_mode<synchronous>, transform_indices = @transform_6, window_bounds = array<i64: 4, 8, 32>}, {pipeline_mode = #tpu.pipeline_mode<synchronous>, transform_indices = @transform_7, window_bounds = array<i64: 1, 32>}, {transform_indices = @transform_8, window_bounds = array<i64: 1, 8, 32>}]} {
    %c0 = arith.constant 0 : index
    %c0_0 = arith.constant 0 : index
    %c0_1 = arith.constant 0 : index
    %0 = vector.load %arg1[%c0, %c0_0, %c0_1] : memref<1x8x32xbf16, #tpu.memory_space<vmem>>, vector<1x8x32xbf16>
    %1 = vector.shape_cast %0 : vector<1x8x32xbf16> to vector<1x1x8x32xbf16>
    %2 = vector.shape_cast %1 : vector<1x1x8x32xbf16> to vector<1x1x8x32xbf16>
    %3 = vector.broadcast %2 : vector<1x1x8x32xbf16> to vector<1x4x8x32xbf16>
    %4 = vector.shape_cast %3 : vector<1x4x8x32xbf16> to vector<4x8x32xbf16>
    %c0_2 = arith.constant 0 : index
    %c0_3 = arith.constant 0 : index
    %c0_4 = arith.constant 0 : index
    %5 = vector.load %arg2[%c0_2, %c0_3, %c0_4] : memref<1x8x32xbf16, #tpu.memory_space<vmem>>, vector<1x8x32xbf16>
    %6 = vector.shape_cast %5 : vector<1x8x32xbf16> to vector<1x1x8x32xbf16>
    %7 = vector.shape_cast %6 : vector<1x1x8x32xbf16> to vector<1x1x8x32xbf16>
    %8 = vector.broadcast %7 : vector<1x1x8x32xbf16> to vector<1x4x8x32xbf16>
    %9 = vector.shape_cast %8 : vector<1x4x8x32xbf16> to vector<4x8x32xbf16>
    %c0_5 = arith.constant 0 : index
    %c0_6 = arith.constant 0 : index
    %c0_7 = arith.constant 0 : index
    %10 = vector.load %arg3[%c0_5, %c0_6, %c0_7] : memref<1x8x32xbf16, #tpu.memory_space<vmem>>, vector<1x8x32xbf16>
    %11 = vector.shape_cast %10 : vector<1x8x32xbf16> to vector<1x1x8x32xbf16>
    %12 = vector.shape_cast %11 : vector<1x1x8x32xbf16> to vector<1x1x8x32xbf16>
    %13 = vector.broadcast %12 : vector<1x1x8x32xbf16> to vector<1x4x8x32xbf16>
    %14 = vector.shape_cast %13 : vector<1x4x8x32xbf16> to vector<4x8x32xbf16>
    %c0_8 = arith.constant 0 : index
    %c0_9 = arith.constant 0 : index
    %c0_10 = arith.constant 0 : index
    %15 = vector.load %arg4[%c0_8, %c0_9, %c0_10] : memref<4x32x8xbf16, #tpu.memory_space<vmem>>, vector<4x32x8xbf16>
    %16 = vector.shape_cast %15 : vector<4x32x8xbf16> to vector<1x4x32x8xbf16>
    %17 = vector.shape_cast %16 : vector<1x4x32x8xbf16> to vector<4x32x8xbf16>
    %c0_11 = arith.constant 0 : index
    %c0_12 = arith.constant 0 : index
    %c0_13 = arith.constant 0 : index
    %18 = vector.load %arg5[%c0_11, %c0_12, %c0_13] : memref<4x32x8xbf16, #tpu.memory_space<vmem>>, vector<4x32x8xbf16>
    %19 = vector.shape_cast %18 : vector<4x32x8xbf16> to vector<1x4x32x8xbf16>
    %20 = vector.shape_cast %19 : vector<1x4x32x8xbf16> to vector<4x32x8xbf16>
    %c0_14 = arith.constant 0 : index
    %c0_15 = arith.constant 0 : index
    %c0_16 = arith.constant 0 : index
    %21 = vector.load %arg6[%c0_14, %c0_15, %c0_16] : memref<4x32x8xbf16, #tpu.memory_space<vmem>>, vector<4x32x8xbf16>
    %22 = vector.shape_cast %21 : vector<4x32x8xbf16> to vector<1x4x32x8xbf16>
    %23 = vector.shape_cast %22 : vector<1x4x32x8xbf16> to vector<4x32x8xbf16>
    %c0_17 = arith.constant 0 : index
    %c0_18 = arith.constant 0 : index
    %c0_19 = arith.constant 0 : index
    %24 = vector.load %arg7[%c0_17, %c0_18, %c0_19] : memref<4x8x32xbf16, #tpu.memory_space<vmem>>, vector<4x8x32xbf16>
    %25 = vector.shape_cast %24 : vector<4x8x32xbf16> to vector<1x4x8x32xbf16>
    %26 = vector.shape_cast %25 : vector<1x4x8x32xbf16> to vector<4x8x32xbf16>
    %cst = arith.constant dense<0.000000e+00> : vector<4x8x8xf32>
    %27 = tpu.matmul %4, %17, %cst {dimension_numbers = #tpu.dot_dimension_numbers<[2], [1], [1], [2], [0, 0, 0, 1, 1, 2], [0], [0]>} : vector<4x8x32xbf16>, vector<4x32x8xbf16>, vector<4x8x8xf32> -> vector<4x8x8xf32>
    %cst_20 = arith.constant dense<0.000000e+00> : vector<4x8x8xf32>
    %28 = tpu.matmul %9, %20, %cst_20 {dimension_numbers = #tpu.dot_dimension_numbers<[2], [1], [1], [2], [0, 0, 0, 1, 1, 2], [0], [0]>} : vector<4x8x32xbf16>, vector<4x32x8xbf16>, vector<4x8x8xf32> -> vector<4x8x8xf32>
    %cst_21 = arith.constant dense<0.000000e+00> : vector<4x8x8xf32>
    %29 = tpu.matmul %14, %23, %cst_21 {dimension_numbers = #tpu.dot_dimension_numbers<[2], [1], [1], [2], [0, 0, 0, 1, 1, 2], [0], [0]>} : vector<4x8x32xbf16>, vector<4x32x8xbf16>, vector<4x8x8xf32> -> vector<4x8x8xf32>
    %30 = arith.truncf %27 : vector<4x8x8xf32> to vector<4x8x8xbf16>
    %31 = arith.truncf %28 : vector<4x8x8xf32> to vector<4x8x8xbf16>
    %cst_22 = arith.constant dense<0.000000e+00> : vector<4x8x8xf32>
    %32 = tpu.matmul %30, %31, %cst_22 {dimension_numbers = #tpu.dot_dimension_numbers<[2], [2], [1], [1], [0, 0, 0, 1, 1, 1], [0], [0]>} : vector<4x8x8xbf16>, vector<4x8x8xbf16>, vector<4x8x8xf32> -> vector<4x8x8xf32>
    %cst_23 = arith.constant 8.000000e+00 : f32
    %cst_24 = arith.constant -5.000000e-01 : f32
    %33 = math.powf %cst_23, %cst_24 : f32
    %34 = vector.broadcast %33 : f32 to vector<4x8x8xf32>
    %35 = arith.mulf %32, %34 : vector<4x8x8xf32>
    %36 = tpu.iota {dimensions = array<i32: 1>} : vector<4x8x8xi32>
    %37 = tpu.iota {dimensions = array<i32: 2>} : vector<4x8x8xi32>
    %38 = arith.cmpi sle, %37, %36 : vector<4x8x8xi32>
    %cst_25 = arith.constant -1.000000e+30 : f32
    %39 = vector.broadcast %cst_25 : f32 to vector<4x8x8xf32>
    %40 = arith.select %38, %35, %39 : vector<4x8x8xi1>, vector<4x8x8xf32>
    %cst_26 = arith.constant dense<0xFF800000> : vector<4x8xf32>
    %41 = vector.multi_reduction <maximumf>, %40, %cst_26 [2] : vector<4x8x8xf32> to vector<4x8xf32>
    %42 = vector.shape_cast %41 : vector<4x8xf32> to vector<4x8x1xf32>
    %43 = vector.broadcast %42 : vector<4x8x1xf32> to vector<4x8x8xf32>
    %44 = arith.subf %40, %43 : vector<4x8x8xf32>
    %45 = math.exp %44 : vector<4x8x8xf32>
    %cst_27 = arith.constant dense<0.000000e+00> : vector<4x8xf32>
    %46 = vector.multi_reduction <add>, %45, %cst_27 [2] : vector<4x8x8xf32> to vector<4x8xf32>
    %47 = vector.shape_cast %46 : vector<4x8xf32> to vector<4x8x1xf32>
    %48 = arith.truncf %45 : vector<4x8x8xf32> to vector<4x8x8xbf16>
    %49 = arith.truncf %29 : vector<4x8x8xf32> to vector<4x8x8xbf16>
    %cst_28 = arith.constant dense<0.000000e+00> : vector<4x8x8xf32>
    %50 = tpu.matmul %48, %49, %cst_28 {dimension_numbers = #tpu.dot_dimension_numbers<[2], [1], [1], [2], [0, 0, 0, 1, 1, 2], [0], [0]>} : vector<4x8x8xbf16>, vector<4x8x8xbf16>, vector<4x8x8xf32> -> vector<4x8x8xf32>
    %51 = tpu.reciprocal %47 {approx = true} : vector<4x8x1xf32> -> vector<4x8x1xf32>
    %52 = vector.broadcast %51 : vector<4x8x1xf32> to vector<4x8x8xf32>
    %53 = arith.mulf %50, %52 : vector<4x8x8xf32>
    %54 = arith.truncf %53 : vector<4x8x8xf32> to vector<4x8x8xbf16>
    %cst_29 = arith.constant dense<0.000000e+00> : vector<4x8x32xf32>
    %55 = tpu.matmul %54, %26, %cst_29 {dimension_numbers = #tpu.dot_dimension_numbers<[2], [1], [1], [2], [0, 0, 0, 1, 1, 2], [0], [0]>} : vector<4x8x8xbf16>, vector<4x8x32xbf16>, vector<4x8x32xf32> -> vector<4x8x32xf32>
    %56 = vector.shape_cast %55 : vector<4x8x32xf32> to vector<1x4x8x32xf32>
    %57 = vector.extract_strided_slice %56 {offsets = [0, 0, 0, 0], sizes = [1, 1, 8, 32], strides = [1, 1, 1, 1]} : vector<1x4x8x32xf32> to vector<1x1x8x32xf32>
    %58 = vector.shape_cast %57 : vector<1x1x8x32xf32> to vector<1x8x32xf32>
    %59 = vector.extract_strided_slice %56 {offsets = [0, 1, 0, 0], sizes = [1, 1, 8, 32], strides = [1, 1, 1, 1]} : vector<1x4x8x32xf32> to vector<1x1x8x32xf32>
    %60 = vector.shape_cast %59 : vector<1x1x8x32xf32> to vector<1x8x32xf32>
    %61 = arith.addf %58, %60 : vector<1x8x32xf32>
    %62 = vector.extract_strided_slice %56 {offsets = [0, 2, 0, 0], sizes = [1, 1, 8, 32], strides = [1, 1, 1, 1]} : vector<1x4x8x32xf32> to vector<1x1x8x32xf32>
    %63 = vector.shape_cast %62 : vector<1x1x8x32xf32> to vector<1x8x32xf32>
    %64 = arith.addf %61, %63 : vector<1x8x32xf32>
    %65 = vector.extract_strided_slice %56 {offsets = [0, 3, 0, 0], sizes = [1, 1, 8, 32], strides = [1, 1, 1, 1]} : vector<1x4x8x32xf32> to vector<1x1x8x32xf32>
    %66 = vector.shape_cast %65 : vector<1x1x8x32xf32> to vector<1x8x32xf32>
    %67 = arith.addf %64, %66 : vector<1x8x32xf32>
    %c0_30 = arith.constant 0 : index
    %c0_31 = arith.constant 0 : index
    %68 = vector.load %arg8[%c0_30, %c0_31] : memref<1x32xf32, #tpu.memory_space<vmem>>, vector<1x32xf32>
    %69 = vector.shape_cast %68 : vector<1x32xf32> to vector<1x1x32xf32>
    %70 = vector.broadcast %69 : vector<1x1x32xf32> to vector<1x8x32xf32>
    %71 = arith.addf %67, %70 : vector<1x8x32xf32>
    %c0_32 = arith.constant 0 : index
    %c0_33 = arith.constant 0 : index
    %c0_34 = arith.constant 0 : index
    %72 = vector.load %arg9[%c0_32, %c0_33, %c0_34] : memref<1x8x32xf32, #tpu.memory_space<vmem>>, vector<1x8x32xf32>
    tpu.vector_store %arg9[%c0_32, %c0_33, %c0_34], %71 {strides = array<i32>} : memref<1x8x32xf32, #tpu.memory_space<vmem>>, vector<1x8x32xf32>,
    return
  }
  func.func @transform_0(%arg0: i32) -> (i32, i32, i32) {
    %c0_i32 = arith.constant 0 : i32
    %c0_i32_0 = arith.constant 0 : i32
    %c0_i32_1 = arith.constant 0 : i32
    return %arg0, %c0_i32, %c0_i32_0 : i32, i32, i32
  }
  func.func @transform_1(%arg0: i32) -> (i32, i32, i32) {
    %c0_i32 = arith.constant 0 : i32
    %c0_i32_0 = arith.constant 0 : i32
    %c0_i32_1 = arith.constant 0 : i32
    return %arg0, %c0_i32, %c0_i32_0 : i32, i32, i32
  }
  func.func @transform_2(%arg0: i32) -> (i32, i32, i32) {
    %c0_i32 = arith.constant 0 : i32
    %c0_i32_0 = arith.constant 0 : i32
    %c0_i32_1 = arith.constant 0 : i32
    return %arg0, %c0_i32, %c0_i32_0 : i32, i32, i32
  }
  func.func @transform_3(%arg0: i32) -> (i32, i32, i32) {
    %c0_i32 = arith.constant 0 : i32
    %c0_i32_0 = arith.constant 0 : i32
    %c0_i32_1 = arith.constant 0 : i32
    %c0_i32_2 = arith.constant 0 : i32
    return %c0_i32, %c0_i32_0, %c0_i32_1 : i32, i32, i32
  }
  func.func @transform_4(%arg0: i32) -> (i32, i32, i32) {
    %c0_i32 = arith.constant 0 : i32
    %c0_i32_0 = arith.constant 0 : i32
    %c0_i32_1 = arith.constant 0 : i32
    %c0_i32_2 = arith.constant 0 : i32
    return %c0_i32, %c0_i32_0, %c0_i32_1 : i32, i32, i32
  }
  func.func @transform_5(%arg0: i32) -> (i32, i32, i32) {
    %c0_i32 = arith.constant 0 : i32
    %c0_i32_0 = arith.constant 0 : i32
    %c0_i32_1 = arith.constant 0 : i32
    %c0_i32_2 = arith.constant 0 : i32
    return %c0_i32, %c0_i32_0, %c0_i32_1 : i32, i32, i32
  }
  func.func @transform_6(%arg0: i32) -> (i32, i32, i32) {
    %c0_i32 = arith.constant 0 : i32
    %c0_i32_0 = arith.constant 0 : i32
    %c0_i32_1 = arith.constant 0 : i32
    %c0_i32_2 = arith.constant 0 : i32
    return %c0_i32, %c0_i32_0, %c0_i32_1 : i32, i32, i32
  }
  func.func @transform_7(%arg0: i32) -> (i32, i32) {
    %c0_i32 = arith.constant 0 : i32
    %c0_i32_0 = arith.constant 0 : i32
    %c0_i32_1 = arith.constant 0 : i32
    return %c0_i32, %c0_i32_0 : i32, i32
  }
  func.func @transform_8(%arg0: i32) -> (i32, i32, i32) {
    %c0_i32 = arith.constant 0 : i32
    %c0_i32_0 = arith.constant 0 : i32
    %c0_i32_1 = arith.constant 0 : i32
    return %arg0, %c0_i32, %c0_i32_0 : i32, i32, i32
  }
}

</mosaic_0001>

<llo_original>
// kernel: tpu_custom_call.1
$region0: #{tpu_custom_call.1}
  #allocation0 [shape = 'u32[]', space=smem, size = 0x4, offset = 0x4, fixed_abs, tag = 'smem constant byte address 0x4 - core index']
  #allocation1 [shape = 'u32[144,128]{1,0:T(1,128)}', space=vmem, size = 0x12000, scoped, tag = 'internal scratch']
  %s0 = inlined_call_operand.vmem [shape: bf16[2,8,32], index: 0, kind: input, shape index: {}]
  %s1 = inlined_call_operand.vmem [shape: bf16[2,8,32], index: 1, kind: input, shape index: {}]
  %s2 = inlined_call_operand.vmem [shape: bf16[2,8,32], index: 2, kind: input, shape index: {}]
  %s3 = inlined_call_operand.vmem [shape: bf16[4,32,8], index: 3, kind: input, shape index: {}]
  %s4 = inlined_call_operand.vmem [shape: bf16[4,32,8], index: 4, kind: input, shape index: {}]
  %s5 = inlined_call_operand.vmem [shape: bf16[4,32,8], index: 5, kind: input, shape index: {}]
  %s6 = inlined_call_operand.vmem [shape: bf16[4,8,32], index: 6, kind: input, shape index: {}]
  %s7 = inlined_call_operand.vmem [shape: f32[1,32], index: 7, kind: input, shape index: {}]
  %s8 = inlined_call_operand.hbm [shape: f32[2,8,32], index: 8, kind: output, shape index: {}]
  %s9 = sld [smem:[#allocation0]]
  $region65: #{tpu_custom_call.1} parent=0
    _
  %s11 = ssub.s32 1, %s9
  %s12 = scalar_select 0, %s11, %s9
  $region1: #{tpu_custom_call.1} parent=0
    #allocation2 [shape = 'u8[8192]{0}', space=vmem, size = 0x2000, scoped, tag = 'output window, operand 0']
    #allocation3 [shape = 's32[2]{0}', space=sflag, size = 0x8, scoped, tag = 'scoped memory for tpu_custom_call.1']
    %13 = vsyncpa [#allocation3], 0
    %s14 = scalar_lea.sflag [#allocation3], 1
    %15 = vsyncpa %s14, 0
    loop: start=0, step=1, limit=4
    $region2: #{tpu_custom_call.1} parent=1 // loop_pre_header
      _
    $region3: #{tpu_custom_call.1} parent=1 // loop_header
      %s17 = sphi 0, %s21
      %p18 = scmp.ge.s32.totalorder %s17, 4
      %s27 = sphi 0, %s29
      %s30 = sphi 0, %s27
      %s31 = sphi 0, %s30
      %s47 = sphi 0, %s31
      %s53 = sphi 0, %s55
      %s56 = sphi 0, %s53
      %s57 = sphi 0, %s56
      %s73 = sphi 0, %s57
      %s79 = sphi 0, %s81
      %s82 = sphi 0, %s79
      %s83 = sphi 0, %s82
      %s99 = sphi 0, %s83
      %s103 = sphi 0, %s103
      %s105 = sphi 0, %s103
      %s106 = sphi 0, %s105
      %s120 = sphi 0, %s106
      %s124 = sphi 0, %s124
      %s126 = sphi 0, %s124
      %s127 = sphi 0, %s126
      %s141 = sphi 0, %s127
      %s145 = sphi 0, %s145
      %s147 = sphi 0, %s145
      %s148 = sphi 0, %s147
      %s162 = sphi 0, %s148
      %s166 = sphi 0, %s166
      %s168 = sphi 0, %s166
      %s169 = sphi 0, %s168
      %s183 = sphi 0, %s169
      %s187 = sphi 0, %s187
      %s189 = sphi 0, %s187
      %s190 = sphi 0, %s189
      %s204 = sphi 0, %s190
      %s210 = sphi 0, %s212
      %s213 = sphi 0, %s210
      %s214 = sphi 0, %s213
      %s230 = sphi 0, %s214
    $region4: #{tpu_custom_call.1} parent=1 // loop_header_branch
      %20 = sbr.rel (%p18) target = $region8
    $region5: #{tpu_custom_call.1} parent=1 // loop_body
      %s22 = ssub.s32 %s17, 1
      %s23 = ssub.s32 %s17, 2
      %s24 = sadd.s32 %s17, 1
      %s25 = ssub.s32 %s17, %s24
      %p26 = scmp.eq.s32.totalorder %s25, 0
      %s28 = sadd.s32 %s27, 1
      %s29 = scalar_select %p26, %s27, %s28
      %p32 = pneg %p26
      %p33 = scmp.eq.s32.totalorder %s17, 1
      %p34 = por %p32, %p33
      %p35 = scmp.ne.s32.totalorder %s27, %s30
      %p36 = scmp.eq.s32.totalorder %s17, 0
      %p37 = por %p35, %p36
      %p38 = scmp.ne.s32.totalorder %s27, %s30
      %p39 = scmp.eq.s32.totalorder %s22, 1
      %p40 = por %p38, %p39
      %p41 = scmp.ne.s32.totalorder %s30, %s31
      %p42 = scmp.eq.s32.totalorder %s22, 0
      %p43 = por %p41, %p42
      %p44 = scmp.ne.s32.totalorder %s30, %s31
      %p45 = scmp.eq.s32.totalorder %s23, 1
      %p46 = por %p44, %p45
      %p48 = scmp.ne.s32.totalorder %s31, %s47
      %p49 = scmp.eq.s32.totalorder %s23, 0
      %p50 = por %p48, %p49
      %s51 = ssub.s32 %s17, %s24
      %p52 = scmp.eq.s32.totalorder %s51, 0
      %s54 = sadd.s32 %s53, 1
      %s55 = scalar_select %p52, %s53, %s54
      %p58 = pneg %p52
      %p59 = scmp.eq.s32.totalorder %s17, 1
      %p60 = por %p58, %p59
      %p61 = scmp.ne.s32.totalorder %s53, %s56
      %p62 = scmp.eq.s32.totalorder %s17, 0
      %p63 = por %p61, %p62
      %p64 = scmp.ne.s32.totalorder %s53, %s56
      %p65 = scmp.eq.s32.totalorder %s22, 1
      %p66 = por %p64, %p65
      %p67 = scmp.ne.s32.totalorder %s56, %s57
      %p68 = scmp.eq.s32.totalorder %s22, 0
      %p69 = por %p67, %p68
      %p70 = scmp.ne.s32.totalorder %s56, %s57
      %p71 = scmp.eq.s32.totalorder %s23, 1
      %p72 = por %p70, %p71
      %p74 = scmp.ne.s32.totalorder %s57, %s73
      %p75 = scmp.eq.s32.totalorder %s23, 0
      %p76 = por %p74, %p75
      %s77 = ssub.s32 %s17, %s24
      %p78 = scmp.eq.s32.totalorder %s77, 0
      %s80 = sadd.s32 %s79, 1
      %s81 = scalar_select %p78, %s79, %s80
      %p84 = pneg %p78
      %p85 = scmp.eq.s32.totalorder %s17, 1
      %p86 = por %p84, %p85
      %p87 = scmp.ne.s32.totalorder %s79, %s82
      %p88 = scmp.eq.s32.totalorder %s17, 0
      %p89 = por %p87, %p88
      %p90 = scmp.ne.s32.totalorder %s79, %s82
      %p91 = scmp.eq.s32.totalorder %s22, 1
      %p92 = por %p90, %p91
      %p93 = scmp.ne.s32.totalorder %s82, %s83
      %p94 = scmp.eq.s32.totalorder %s22, 0
      %p95 = por %p93, %p94
      %p96 = scmp.ne.s32.totalorder %s82, %s83
      %p97 = scmp.eq.s32.totalorder %s23, 1
      %p98 = por %p96, %p97
      %p100 = scmp.ne.s32.totalorder %s83, %s99
      %p101 = scmp.eq.s32.totalorder %s23, 0
      %p102 = por %p100, %p101
      %s104 = sadd.s32 %s103, 1
      %p107 = scmp.eq.s32.totalorder %s17, 1
      %p108 = scmp.ne.s32.totalorder %s103, %s105
      %p109 = scmp.eq.s32.totalorder %s17, 0
      %p110 = por %p108, %p109
      %p111 = scmp.ne.s32.totalorder %s103, %s105
      %p112 = scmp.eq.s32.totalorder %s22, 1
      %p113 = por %p111, %p112
      %p114 = scmp.ne.s32.totalorder %s105, %s106
      %p115 = scmp.eq.s32.totalorder %s22, 0
      %p116 = por %p114, %p115
      %p117 = scmp.ne.s32.totalorder %s105, %s106
      %p118 = scmp.eq.s32.totalorder %s23, 1
      %p119 = por %p117, %p118
      %p121 = scmp.ne.s32.totalorder %s106, %s120
      %p122 = scmp.eq.s32.totalorder %s23, 0
      %p123 = por %p121, %p122
      %s125 = sadd.s32 %s124, 1
      %p128 = scmp.eq.s32.totalorder %s17, 1
      %p129 = scmp.ne.s32.totalorder %s124, %s126
      %p130 = scmp.eq.s32.totalorder %s17, 0
      %p131 = por %p129, %p130
      %p132 = scmp.ne.s32.totalorder %s124, %s126
      %p133 = scmp.eq.s32.totalorder %s22, 1
      %p134 = por %p132, %p133
      %p135 = scmp.ne.s32.totalorder %s126, %s127
      %p136 = scmp.eq.s32.totalorder %s22, 0
      %p137 = por %p135, %p136
      %p138 = scmp.ne.s32.totalorder %s126, %s127
      %p139 = scmp.eq.s32.totalorder %s23, 1
      %p140 = por %p138, %p139
      %p142 = scmp.ne.s32.totalorder %s127, %s141
      %p143 = scmp.eq.s32.totalorder %s23, 0
      %p144 = por %p142, %p143
      %s146 = sadd.s32 %s145, 1
      %p149 = scmp.eq.s32.totalorder %s17, 1
      %p150 = scmp.ne.s32.totalorder %s145, %s147
      %p151 = scmp.eq.s32.totalorder %s17, 0
      %p152 = por %p150, %p151
      %p153 = scmp.ne.s32.totalorder %s145, %s147
      %p154 = scmp.eq.s32.totalorder %s22, 1
      %p155 = por %p153, %p154
      %p156 = scmp.ne.s32.totalorder %s147, %s148
      %p157 = scmp.eq.s32.totalorder %s22, 0
      %p158 = por %p156, %p157
      %p159 = scmp.ne.s32.totalorder %s147, %s148
      %p160 = scmp.eq.s32.totalorder %s23, 1
      %p161 = por %p159, %p160
      %p163 = scmp.ne.s32.totalorder %s148, %s162
      %p164 = scmp.eq.s32.totalorder %s23, 0
      %p165 = por %p163, %p164
      %s167 = sadd.s32 %s166, 1
      %p170 = scmp.eq.s32.totalorder %s17, 1
      %p171 = scmp.ne.s32.totalorder %s166, %s168
      %p172 = scmp.eq.s32.totalorder %s17, 0
      %p173 = por %p171, %p172
      %p174 = scmp.ne.s32.totalorder %s166, %s168
      %p175 = scmp.eq.s32.totalorder %s22, 1
      %p176 = por %p174, %p175
      %p177 = scmp.ne.s32.totalorder %s168, %s169
      %p178 = scmp.eq.s32.totalorder %s22, 0
      %p179 = por %p177, %p178
      %p180 = scmp.ne.s32.totalorder %s168, %s169
      %p181 = scmp.eq.s32.totalorder %s23, 1
      %p182 = por %p180, %p181
      %p184 = scmp.ne.s32.totalorder %s169, %s183
      %p185 = scmp.eq.s32.totalorder %s23, 0
      %p186 = por %p184, %p185
      %s188 = sadd.s32 %s187, 1
      %p191 = scmp.eq.s32.totalorder %s17, 1
      %p192 = scmp.ne.s32.totalorder %s187, %s189
      %p193 = scmp.eq.s32.totalorder %s17, 0
      %p194 = por %p192, %p193
      %p195 = scmp.ne.s32.totalorder %s187, %s189
      %p196 = scmp.eq.s32.totalorder %s22, 1
      %p197 = por %p195, %p196
      %p198 = scmp.ne.s32.totalorder %s189, %s190
      %p199 = scmp.eq.s32.totalorder %s22, 0
      %p200 = por %p198, %p199
      %p201 = scmp.ne.s32.totalorder %s189, %s190
      %p202 = scmp.eq.s32.totalorder %s23, 1
      %p203 = por %p201, %p202
      %p205 = scmp.ne.s32.totalorder %s190, %s204
      %p206 = scmp.eq.s32.totalorder %s23, 0
      %p207 = por %p205, %p206
      %s208 = ssub.s32 %s17, %s24
      %p209 = scmp.eq.s32.totalorder %s208, 0
      %s211 = sadd.s32 %s210, 1
      %s212 = scalar_select %p209, %s210, %s211
      %p215 = pneg %p209
      %p216 = scmp.eq.s32.totalorder %s17, 1
      %p217 = por %p215, %p216
      %p218 = scmp.ne.s32.totalorder %s210, %s213
      %p219 = scmp.eq.s32.totalorder %s17, 0
      %p220 = por %p218, %p219
      %p221 = scmp.ne.s32.totalorder %s210, %s213
      %p222 = scmp.eq.s32.totalorder %s22, 1
      %p223 = por %p221, %p222
      %p224 = scmp.ne.s32.totalorder %s213, %s214
      %p225 = scmp.eq.s32.totalorder %s22, 0
      %p226 = por %p224, %p225
      %p227 = scmp.ne.s32.totalorder %s213, %s214
      %p228 = scmp.eq.s32.totalorder %s23, 1
      %p229 = por %p227, %p228
      %p231 = scmp.ne.s32.totalorder %s214, %s230
      %p232 = scmp.eq.s32.totalorder %s23, 0
      %p233 = por %p231, %p232
      %p234 = scmp.le.s32.totalorder 1, %s17
      %p235 = scmp.lt.s32.totalorder %s17, 3
      %p236 = pnand %p234, %p235
      %p237 = pneg %p236
      // Predicated region
      $region9: #{tpu_custom_call.1} parent=5 // pred_check
        _
      $region10: #{tpu_custom_call.1} parent=5 // pred_check_branch
        %239 = sbr.rel (%p236) target = $region12
      $region11: #{tpu_custom_call.1} parent=5 // pred_region
        %s240 = ssub.s32 %s17, 1
        // Predicated region
        $region13: #{tpu_custom_call.1} parent=11 // pred_check
          %p241 = pneg %p116
        $region14: #{tpu_custom_call.1} parent=11 // pred_check_branch
          %243 = sbr.rel (%p241) target = $region16
        $region15: #{tpu_custom_call.1} parent=11 // pred_region
          _
        $region16: #{tpu_custom_call.1} parent=11 // pred_fallthru
          _
        // Predicated region
        $region17: #{tpu_custom_call.1} parent=11 // pred_check
          %p244 = pneg %p137
        $region18: #{tpu_custom_call.1} parent=11 // pred_check_branch
          %246 = sbr.rel (%p244) target = $region20
        $region19: #{tpu_custom_call.1} parent=11 // pred_region
          _
        $region20: #{tpu_custom_call.1} parent=11 // pred_fallthru
          _
        // Predicated region
        $region21: #{tpu_custom_call.1} parent=11 // pred_check
          %p247 = pneg %p158
        $region22: #{tpu_custom_call.1} parent=11 // pred_check_branch
          %249 = sbr.rel (%p247) target = $region24
        $region23: #{tpu_custom_call.1} parent=11 // pred_region
          _
        $region24: #{tpu_custom_call.1} parent=11 // pred_fallthru
          _
        // Predicated region
        $region25: #{tpu_custom_call.1} parent=11 // pred_check
          %p250 = pneg %p179
        $region26: #{tpu_custom_call.1} parent=11 // pred_check_branch
          %252 = sbr.rel (%p250) target = $region28
        $region27: #{tpu_custom_call.1} parent=11 // pred_region
          _
        $region28: #{tpu_custom_call.1} parent=11 // pred_fallthru
          _
        // Predicated region
        $region29: #{tpu_custom_call.1} parent=11 // pred_check
          %p253 = pneg %p200
        $region30: #{tpu_custom_call.1} parent=11 // pred_check_branch
          %255 = sbr.rel (%p253) target = $region32
        $region31: #{tpu_custom_call.1} parent=11 // pred_region
          _
        $region32: #{tpu_custom_call.1} parent=11 // pred_fallthru
          _
      $region12: #{tpu_custom_call.1} parent=5 // pred_fallthru
        _
      %p256 = scmp.lt.s32.totalorder %s17, 2
      // Predicated region
      $region33: #{tpu_custom_call.1} parent=5 // pred_check
        %p257 = pneg %p256
      $region34: #{tpu_custom_call.1} parent=5 // pred_check_branch
        %259 = sbr.rel (%p257) target = $region36
      $region35: #{tpu_custom_call.1} parent=5 // pred_region
        // Predicated region
        $region37: #{tpu_custom_call.1} parent=35 // pred_check
          %p260 = pneg %p37
        $region38: #{tpu_custom_call.1} parent=35 // pred_check_branch
          %262 = sbr.rel (%p260) target = $region40
        $region39: #{tpu_custom_call.1} parent=35 // pred_region
          %p263 = scmp.lt.s32.totalorder %s17, 1
          %s264 = scalar_select %p263, %s17, 1
          %s265 = smul.addr %s264, 4
          %s266 = scalar_lea.vmem %s0, %s265
        $region40: #{tpu_custom_call.1} parent=35 // pred_fallthru
          _
        // Predicated region
        $region41: #{tpu_custom_call.1} parent=35 // pred_check
          %p267 = pneg %p63
        $region42: #{tpu_custom_call.1} parent=35 // pred_check_branch
          %269 = sbr.rel (%p267) target = $region44
        $region43: #{tpu_custom_call.1} parent=35 // pred_region
          %p270 = scmp.lt.s32.totalorder %s17, 1
          %s271 = scalar_select %p270, %s17, 1
          %s272 = smul.addr %s271, 4
          %s273 = scalar_lea.vmem %s1, %s272
        $region44: #{tpu_custom_call.1} parent=35 // pred_fallthru
          _
        // Predicated region
        $region45: #{tpu_custom_call.1} parent=35 // pred_check
          %p274 = pneg %p89
        $region46: #{tpu_custom_call.1} parent=35 // pred_check_branch
          %276 = sbr.rel (%p274) target = $region48
        $region47: #{tpu_custom_call.1} parent=35 // pred_region
          %p277 = scmp.lt.s32.totalorder %s17, 1
          %s278 = scalar_select %p277, %s17, 1
          %s279 = smul.addr %s278, 4
          %s280 = scalar_lea.vmem %s2, %s279
        $region48: #{tpu_custom_call.1} parent=35 // pred_fallthru
          _
      $region36: #{tpu_custom_call.1} parent=5 // pred_fallthru
        _
      %p281 = scmp.le.s32.totalorder 1, %s17
      %p282 = scmp.lt.s32.totalorder %s17, 3
      %p283 = pnand %p281, %p282
      %p284 = pneg %p283
      // Predicated region
      $region49: #{tpu_custom_call.1} parent=5 // pred_check
        _
      $region50: #{tpu_custom_call.1} parent=5 // pred_check_branch
        %286 = sbr.rel (%p283) target = $region52
      $region51: #{tpu_custom_call.1} parent=5 // pred_region
        %s287 = ssub.s32 %s17, 1
        %p288 = scmp.lt.s32.totalorder %s22, 1
        %s289 = scalar_select %p288, %s22, 1
        %s290 = smul.addr %s289, 4
        %s291 = scalar_lea.vmem %s0, %s290
        %p292 = pneg %p43
        %p293 = pneg %p40
        %p294 = scmp.lt.s32.totalorder %s22, 1
        %s295 = scalar_select %p294, %s22, 1
        %s296 = smul.addr %s295, 4
        %s297 = scalar_lea.vmem %s1, %s296
        %p298 = pneg %p69
        %p299 = pneg %p66
        %p300 = scmp.lt.s32.totalorder %s22, 1
        %s301 = scalar_select %p300, %s22, 1
        %s302 = smul.addr %s301, 4
        %s303 = scalar_lea.vmem %s2, %s302
        %p304 = pneg %p95
        %p305 = pneg %p92
        %p306 = pneg %p116
        %p307 = pneg %p113
        %p308 = pneg %p137
        %p309 = pneg %p134
        %p310 = pneg %p158
        %p311 = pneg %p155
        %p312 = pneg %p179
        %p313 = pneg %p176
        %p314 = pneg %p200
        %p315 = pneg %p197
        %p316 = pneg %p226
        %p317 = pneg %p223
        %s318 = sand.u32 %s213, 1
        %s319 = scalar_lea.sflag [#allocation3], %s318
        %s320 = sand.u32 %s213, 1
        %s321 = smul.addr %s320, 8
        %s322 = scalar_lea.vmem [#allocation2], %s321
        %p323 = scmp.lt.s32.totalorder %s22, 1
        %s324 = scalar_select %p323, %s22, 1
        %s325 = smul.addr %s324, 4
        %s326 = scalar_lea.vmem %s0, %s325
        %p327 = scmp.lt.s32.totalorder %s22, 1
        %s328 = scalar_select %p327, %s22, 1
        %s329 = smul.addr %s328, 4
        %s330 = scalar_lea.vmem %s1, %s329
        %p331 = scmp.lt.s32.totalorder %s22, 1
        %s332 = scalar_select %p331, %s22, 1
        %s333 = smul.addr %s332, 4
        %s334 = scalar_lea.vmem %s2, %s333
        %v336 = vld [vmem:[%s326] sm:$0xf]
        %v337 = vld [vmem:[%s330] sm:$0xf]
        %v338 = vld [vmem:[%s334] sm:$0xf]
        %v339 = vld [vmem:[%s3] sm:$0xf]
        %v340 = vld [vmem:[%s3 + $0x4] sm:$0xf]
        %v341 = vld [vmem:[%s3 + $0x8] sm:$0xf]
        %v342 = vld [vmem:[%s3 + $0xc] sm:$0xf]
        %v343 = vld [vmem:[%s3 + $0x10] sm:$0xf]
        %v344 = vld [vmem:[%s3 + $0x14] sm:$0xf]
        %v345 = vld [vmem:[%s3 + $0x18] sm:$0xf]
        %v346 = vld [vmem:[%s3 + $0x1c] sm:$0xf]
        %v347 = vld [vmem:[%s3 + $0x20] sm:$0xf]
        %v348 = vld [vmem:[%s3 + $0x24] sm:$0xf]
        %v349 = vld [vmem:[%s3 + $0x28] sm:$0xf]
        %v350 = vld [vmem:[%s3 + $0x2c] sm:$0xf]
        %v351 = vld [vmem:[%s3 + $0x30] sm:$0xf]
        %v352 = vld [vmem:[%s3 + $0x34] sm:$0xf]
        %v353 = vld [vmem:[%s3 + $0x38] sm:$0xf]
        %v354 = vld [vmem:[%s3 + $0x3c] sm:$0xf]
        %v355 = vld [vmem:[%s4] sm:$0xf]
        %v356 = vld [vmem:[%s4 + $0x4] sm:$0xf]
        %v357 = vld [vmem:[%s4 + $0x8] sm:$0xf]
        %v358 = vld [vmem:[%s4 + $0xc] sm:$0xf]
        %v359 = vld [vmem:[%s4 + $0x10] sm:$0xf]
        %v360 = vld [vmem:[%s4 + $0x14] sm:$0xf]
        %v361 = vld [vmem:[%s4 + $0x18] sm:$0xf]
        %v362 = vld [vmem:[%s4 + $0x1c] sm:$0xf]
        %v363 = vld [vmem:[%s4 + $0x20] sm:$0xf]
        %v364 = vld [vmem:[%s4 + $0x24] sm:$0xf]
        %v365 = vld [vmem:[%s4 + $0x28] sm:$0xf]
        %v366 = vld [vmem:[%s4 + $0x2c] sm:$0xf]
        %v367 = vld [vmem:[%s4 + $0x30] sm:$0xf]
        %v368 = vld [vmem:[%s4 + $0x34] sm:$0xf]
        %v369 = vld [vmem:[%s4 + $0x38] sm:$0xf]
        %v370 = vld [vmem:[%s4 + $0x3c] sm:$0xf]
        %v371 = vld [vmem:[%s5] sm:$0xf]
        %v372 = vld [vmem:[%s5 + $0x4] sm:$0xf]
        %v373 = vld [vmem:[%s5 + $0x8] sm:$0xf]
        %v374 = vld [vmem:[%s5 + $0xc] sm:$0xf]
        %v375 = vld [vmem:[%s5 + $0x10] sm:$0xf]
        %v376 = vld [vmem:[%s5 + $0x14] sm:$0xf]
        %v377 = vld [vmem:[%s5 + $0x18] sm:$0xf]
        %v378 = vld [vmem:[%s5 + $0x1c] sm:$0xf]
        %v379 = vld [vmem:[%s5 + $0x20] sm:$0xf]
        %v380 = vld [vmem:[%s5 + $0x24] sm:$0xf]
        %v381 = vld [vmem:[%s5 + $0x28] sm:$0xf]
        %v382 = vld [vmem:[%s5 + $0x2c] sm:$0xf]
        %v383 = vld [vmem:[%s5 + $0x30] sm:$0xf]
        %v384 = vld [vmem:[%s5 + $0x34] sm:$0xf]
        %v385 = vld [vmem:[%s5 + $0x38] sm:$0xf]
        %v386 = vld [vmem:[%s5 + $0x3c] sm:$0xf]
        %v387 = vld [vmem:[%s6] sm:$0xf]
        %v388 = vld [vmem:[%s6 + $0x4] sm:$0xf]
        %v389 = vld [vmem:[%s6 + $0x8] sm:$0xf]
        %v390 = vld [vmem:[%s6 + $0xc] sm:$0xf]
        %v395 = vunpack.c.l.b16 %v339
        %v396 = vunpack.c.l.b16 %v340
        %v397 = vunpack.c.l.b16 %v341
        %v398 = vunpack.c.l.b16 %v342
        %v399 = vpack.c.b16 %v396, %v395
        %v400 = vpack.c.b16 %v398, %v397
        %vm403 = vcmask 261120
        %v405 = vsel %vm403, %v336, 0
        %407 = vmatprep.subr.bf16.mxu0 0
        %408 = vmatpush1.bf16.msra.mxu0 %v399
        %409 = vmatprep.subr.bf16.mxu0 0
        %410 = vmatpush1.bf16.msra.mxu0 %v400
        %411 = vmatprep.subr.bf16.mxu0 0
        %412 = vmatpush1.bf16.msra.mxu0 0
        %413 = vmatprep.subr.bf16.mxu0 0
        %414 = vmatpush1.bf16.msra.mxu0 0
        %415 = vmatprep.subr.bf16.mxu0 0
        %416 = vmatpush1.bf16.msra.mxu0 0
        %417 = vmatprep.subr.bf16.mxu0 0
        %418 = vmatpush1.bf16.msra.mxu0 0
        %419 = vmatprep.subr.bf16.mxu0 0
        %420 = vmatpush1.bf16.msra.mxu0 0
        %421 = vmatprep.subr.bf16.mxu0 0
        %422 = vmatpush1.bf16.msra.mxu0 0
        %423 = vmatprep.subr.bf16.mxu0 0
        %424 = vmatpush1.bf16.msra.mxu0 0
        %425 = vmatprep.subr.bf16.mxu0 0
        %426 = vmatpush1.bf16.msra.mxu0 0
        %427 = vmatprep.subr.bf16.mxu0 0
        %428 = vmatpush1.bf16.msra.mxu0 0
        %429 = vmatprep.subr.bf16.mxu0 0
        %430 = vmatpush1.bf16.msra.mxu0 0
        %431 = vmatprep.subr.bf16.mxu0 0
        %432 = vmatpush1.bf16.msra.mxu0 0
        %433 = vmatprep.subr.bf16.mxu0 0
        %434 = vmatpush1.bf16.msra.mxu0 0
        %435 = vmatprep.subr.bf16.mxu0 0
        %436 = vmatpush1.bf16.msra.mxu0 0
        %437 = vmatprep.subr.bf16.mxu0 0
        %438 = vmatpush1.bf16.msra.mxu0 0
        %439 = vmatprep.mubr.bf16.mxu0 0
        %440 = vmatmul.mubr.bf16.gmra.mrb[0].mxu0 %v405
        %v441 = vpop.f32.mrb[0].mxu0
        %v442 = vadd.f32 0.0, %v441
        %v443 = vpop.f32.mrb[0].mxu0
        %v444 = vpop.f32.mrb[0].mxu0
        %v445 = vpop.f32.mrb[0].mxu0
        %446 = vdwg.mxu0
        %v451 = vunpack.c.l.b16 %v343
        %v452 = vunpack.c.l.b16 %v344
        %v453 = vunpack.c.l.b16 %v345
        %v454 = vunpack.c.l.b16 %v346
        %v455 = vpack.c.b16 %v452, %v451
        %v456 = vpack.c.b16 %v454, %v453
        %459 = vmatprep.subr.bf16.mxu0 0
        %460 = vmatpush1.bf16.msra.mxu0 %v455
        %461 = vmatprep.subr.bf16.mxu0 0
        %462 = vmatpush1.bf16.msra.mxu0 %v456
        %463 = vmatprep.subr.bf16.mxu0 0
        %464 = vmatpush1.bf16.msra.mxu0 0
        %465 = vmatprep.subr.bf16.mxu0 0
        %466 = vmatpush1.bf16.msra.mxu0 0
        %467 = vmatprep.subr.bf16.mxu0 0
        %468 = vmatpush1.bf16.msra.mxu0 0
        %469 = vmatprep.subr.bf16.mxu0 0
        %470 = vmatpush1.bf16.msra.mxu0 0
        %471 = vmatprep.subr.bf16.mxu0 0
        %472 = vmatpush1.bf16.msra.mxu0 0
        %473 = vmatprep.subr.bf16.mxu0 0
        %474 = vmatpush1.bf16.msra.mxu0 0
        %475 = vmatprep.subr.bf16.mxu0 0
        %476 = vmatpush1.bf16.msra.mxu0 0
        %477 = vmatprep.subr.bf16.mxu0 0
        %478 = vmatpush1.bf16.msra.mxu0 0
        %479 = vmatprep.subr.bf16.mxu0 0
        %480 = vmatpush1.bf16.msra.mxu0 0
        %481 = vmatprep.subr.bf16.mxu0 0
        %482 = vmatpush1.bf16.msra.mxu0 0
        %483 = vmatprep.subr.bf16.mxu0 0
        %484 = vmatpush1.bf16.msra.mxu0 0
        %485 = vmatprep.subr.bf16.mxu0 0
        %486 = vmatpush1.bf16.msra.mxu0 0
        %487 = vmatprep.subr.bf16.mxu0 0
        %488 = vmatpush1.bf16.msra.mxu0 0
        %489 = vmatprep.subr.bf16.mxu0 0
        %490 = vmatpush1.bf16.msra.mxu0 0
        %491 = vmatprep.mubr.bf16.mxu0 0
        %492 = vmatmul.mubr.bf16.gmra.mrb[0].mxu0 %v405
        %v493 = vpop.f32.mrb[0].mxu0
        %v494 = vadd.f32 0.0, %v493
        %v495 = vpop.f32.mrb[0].mxu0
        %v496 = vpop.f32.mrb[0].mxu0
        %v497 = vpop.f32.mrb[0].mxu0
        %498 = vdwg.mxu0
        %v503 = vunpack.c.l.b16 %v347
        %v504 = vunpack.c.l.b16 %v348
        %v505 = vunpack.c.l.b16 %v349
        %v506 = vunpack.c.l.b16 %v350
        %v507 = vpack.c.b16 %v504, %v503
        %v508 = vpack.c.b16 %v506, %v505
        %511 = vmatprep.subr.bf16.mxu0 0
        %512 = vmatpush1.bf16.msra.mxu0 %v507
        %513 = vmatprep.subr.bf16.mxu0 0
        %514 = vmatpush1.bf16.msra.mxu0 %v508
        %515 = vmatprep.subr.bf16.mxu0 0
        %516 = vmatpush1.bf16.msra.mxu0 0
        %517 = vmatprep.subr.bf16.mxu0 0
        %518 = vmatpush1.bf16.msra.mxu0 0
        %519 = vmatprep.subr.bf16.mxu0 0
        %520 = vmatpush1.bf16.msra.mxu0 0
        %521 = vmatprep.subr.bf16.mxu0 0
        %522 = vmatpush1.bf16.msra.mxu0 0
        %523 = vmatprep.subr.bf16.mxu0 0
        %524 = vmatpush1.bf16.msra.mxu0 0
        %525 = vmatprep.subr.bf16.mxu0 0
        %526 = vmatpush1.bf16.msra.mxu0 0
        %527 = vmatprep.subr.bf16.mxu0 0
        %528 = vmatpush1.bf16.msra.mxu0 0
        %529 = vmatprep.subr.bf16.mxu0 0
        %530 = vmatpush1.bf16.msra.mxu0 0
        %531 = vmatprep.subr.bf16.mxu0 0
        %532 = vmatpush1.bf16.msra.mxu0 0
        %533 = vmatprep.subr.bf16.mxu0 0
        %534 = vmatpush1.bf16.msra.mxu0 0
        %535 = vmatprep.subr.bf16.mxu0 0
        %536 = vmatpush1.bf16.msra.mxu0 0
        %537 = vmatprep.subr.bf16.mxu0 0
        %538 = vmatpush1.bf16.msra.mxu0 0
        %539 = vmatprep.subr.bf16.mxu0 0
        %540 = vmatpush1.bf16.msra.mxu0 0
        %541 = vmatprep.subr.bf16.mxu0 0
        %542 = vmatpush1.bf16.msra.mxu0 0
        %543 = vmatprep.mubr.bf16.mxu0 0
        %544 = vmatmul.mubr.bf16.gmra.mrb[0].mxu0 %v405
        %v545 = vpop.f32.mrb[0].mxu0
        %v546 = vadd.f32 0.0, %v545
        %v547 = vpop.f32.mrb[0].mxu0
        %v548 = vpop.f32.mrb[0].mxu0
        %v549 = vpop.f32.mrb[0].mxu0
        %550 = vdwg.mxu0
        %v555 = vunpack.c.l.b16 %v351
        %v556 = vunpack.c.l.b16 %v352
        %v557 = vunpack.c.l.b16 %v353
        %v558 = vunpack.c.l.b16 %v354
        %v559 = vpack.c.b16 %v556, %v555
        %v560 = vpack.c.b16 %v558, %v557
        %563 = vmatprep.subr.bf16.mxu0 0
        %564 = vmatpush1.bf16.msra.mxu0 %v559
        %565 = vmatprep.subr.bf16.mxu0 0
        %566 = vmatpush1.bf16.msra.mxu0 %v560
        %567 = vmatprep.subr.bf16.mxu0 0
        %568 = vmatpush1.bf16.msra.mxu0 0
        %569 = vmatprep.subr.bf16.mxu0 0
        %570 = vmatpush1.bf16.msra.mxu0 0
        %571 = vmatprep.subr.bf16.mxu0 0
        %572 = vmatpush1.bf16.msra.mxu0 0
        %573 = vmatprep.subr.bf16.mxu0 0
        %574 = vmatpush1.bf16.msra.mxu0 0
        %575 = vmatprep.subr.bf16.mxu0 0
        %576 = vmatpush1.bf16.msra.mxu0 0
        %577 = vmatprep.subr.bf16.mxu0 0
        %578 = vmatpush1.bf16.msra.mxu0 0
        %579 = vmatprep.subr.bf16.mxu0 0
        %580 = vmatpush1.bf16.msra.mxu0 0
        %581 = vmatprep.subr.bf16.mxu0 0
        %582 = vmatpush1.bf16.msra.mxu0 0
        %583 = vmatprep.subr.bf16.mxu0 0
        %584 = vmatpush1.bf16.msra.mxu0 0
        %585 = vmatprep.subr.bf16.mxu0 0
        %586 = vmatpush1.bf16.msra.mxu0 0
        %587 = vmatprep.subr.bf16.mxu0 0
        %588 = vmatpush1.bf16.msra.mxu0 0
        %589 = vmatprep.subr.bf16.mxu0 0
        %590 = vmatpush1.bf16.msra.mxu0 0
        %591 = vmatprep.subr.bf16.mxu0 0
        %592 = vmatpush1.bf16.msra.mxu0 0
        %593 = vmatprep.subr.bf16.mxu0 0
        %594 = vmatpush1.bf16.msra.mxu0 0
        %595 = vmatprep.mubr.bf16.mxu0 0
        %596 = vmatmul.mubr.bf16.gmra.mrb[0].mxu0 %v405
        %v597 = vpop.f32.mrb[0].mxu0
        %v598 = vadd.f32 0.0, %v597
        %v599 = vpop.f32.mrb[0].mxu0
        %v600 = vpop.f32.mrb[0].mxu0
        %v601 = vpop.f32.mrb[0].mxu0
        %602 = vdwg.mxu0
        %v607 = vunpack.c.l.b16 %v355
        %v608 = vunpack.c.l.b16 %v356
        %v609 = vunpack.c.l.b16 %v357
        %v610 = vunpack.c.l.b16 %v358
        %v611 = vpack.c.b16 %v608, %v607
        %v612 = vpack.c.b16 %v610, %v609
        %v616 = vsel %vm403, %v337, 0
        %618 = vmatprep.subr.bf16.mxu0 0
        %619 = vmatpush1.bf16.msra.mxu0 %v611
        %620 = vmatprep.subr.bf16.mxu0 0
        %621 = vmatpush1.bf16.msra.mxu0 %v612
        %622 = vmatprep.subr.bf16.mxu0 0
        %623 = vmatpush1.bf16.msra.mxu0 0
        %624 = vmatprep.subr.bf16.mxu0 0
        %625 = vmatpush1.bf16.msra.mxu0 0
        %626 = vmatprep.subr.bf16.mxu0 0
        %627 = vmatpush1.bf16.msra.mxu0 0
        %628 = vmatprep.subr.bf16.mxu0 0
        %629 = vmatpush1.bf16.msra.mxu0 0
        %630 = vmatprep.subr.bf16.mxu0 0
        %631 = vmatpush1.bf16.msra.mxu0 0
        %632 = vmatprep.subr.bf16.mxu0 0
        %633 = vmatpush1.bf16.msra.mxu0 0
        %634 = vmatprep.subr.bf16.mxu0 0
        %635 = vmatpush1.bf16.msra.mxu0 0
        %636 = vmatprep.subr.bf16.mxu0 0
        %637 = vmatpush1.bf16.msra.mxu0 0
        %638 = vmatprep.subr.bf16.mxu0 0
        %639 = vmatpush1.bf16.msra.mxu0 0
        %640 = vmatprep.subr.bf16.mxu0 0
        %641 = vmatpush1.bf16.msra.mxu0 0
        %642 = vmatprep.subr.bf16.mxu0 0
        %643 = vmatpush1.bf16.msra.mxu0 0
        %644 = vmatprep.subr.bf16.mxu0 0
        %645 = vmatpush1.bf16.msra.mxu0 0
        %646 = vmatprep.subr.bf16.mxu0 0
        %647 = vmatpush1.bf16.msra.mxu0 0
        %648 = vmatprep.subr.bf16.mxu0 0
        %649 = vmatpush1.bf16.msra.mxu0 0
        %650 = vmatprep.mubr.bf16.mxu0 0
        %651 = vmatmul.mubr.bf16.gmra.mrb[0].mxu0 %v616
        %v652 = vpop.f32.mrb[0].mxu0
        %v653 = vadd.f32 0.0, %v652
        %v654 = vpop.f32.mrb[0].mxu0
        %v655 = vpop.f32.mrb[0].mxu0
        %v656 = vpop.f32.mrb[0].mxu0
        %657 = vdwg.mxu0
        %v662 = vunpack.c.l.b16 %v359
        %v663 = vunpack.c.l.b16 %v360
        %v664 = vunpack.c.l.b16 %v361
        %v665 = vunpack.c.l.b16 %v362
        %v666 = vpack.c.b16 %v663, %v662
        %v667 = vpack.c.b16 %v665, %v664
        %670 = vmatprep.subr.bf16.mxu0 0
        %671 = vmatpush1.bf16.msra.mxu0 %v666
        %672 = vmatprep.subr.bf16.mxu0 0
        %673 = vmatpush1.bf16.msra.mxu0 %v667
        %674 = vmatprep.subr.bf16.mxu0 0
        %675 = vmatpush1.bf16.msra.mxu0 0
        %676 = vmatprep.subr.bf16.mxu0 0
        %677 = vmatpush1.bf16.msra.mxu0 0
        %678 = vmatprep.subr.bf16.mxu0 0
        %679 = vmatpush1.bf16.msra.mxu0 0
        %680 = vmatprep.subr.bf16.mxu0 0
        %681 = vmatpush1.bf16.msra.mxu0 0
        %682 = vmatprep.subr.bf16.mxu0 0
        %683 = vmatpush1.bf16.msra.mxu0 0
        %684 = vmatprep.subr.bf16.mxu0 0
        %685 = vmatpush1.bf16.msra.mxu0 0
        %686 = vmatprep.subr.bf16.mxu0 0
        %687 = vmatpush1.bf16.msra.mxu0 0
        %688 = vmatprep.subr.bf16.mxu0 0
        %689 = vmatpush1.bf16.msra.mxu0 0
        %690 = vmatprep.subr.bf16.mxu0 0
        %691 = vmatpush1.bf16.msra.mxu0 0
        %692 = vmatprep.subr.bf16.mxu0 0
        %693 = vmatpush1.bf16.msra.mxu0 0
        %694 = vmatprep.subr.bf16.mxu0 0
        %695 = vmatpush1.bf16.msra.mxu0 0
        %696 = vmatprep.subr.bf16.mxu0 0
        %697 = vmatpush1.bf16.msra.mxu0 0
        %698 = vmatprep.subr.bf16.mxu0 0
        %699 = vmatpush1.bf16.msra.mxu0 0
        %700 = vmatprep.subr.bf16.mxu0 0
        %701 = vmatpush1.bf16.msra.mxu0 0
        %702 = vmatprep.mubr.bf16.mxu0 0
        %703 = vmatmul.mubr.bf16.gmra.mrb[0].mxu0 %v616
        %v704 = vpop.f32.mrb[0].mxu0
        %v705 = vadd.f32 0.0, %v704
        %v706 = vpop.f32.mrb[0].mxu0
        %v707 = vpop.f32.mrb[0].mxu0
        %v708 = vpop.f32.mrb[0].mxu0
        %709 = vdwg.mxu0
        %v714 = vunpack.c.l.b16 %v363
        %v715 = vunpack.c.l.b16 %v364
        %v716 = vunpack.c.l.b16 %v365
        %v717 = vunpack.c.l.b16 %v366
        %v718 = vpack.c.b16 %v715, %v714
        %v719 = vpack.c.b16 %v717, %v716
        %722 = vmatprep.subr.bf16.mxu0 0
        %723 = vmatpush1.bf16.msra.mxu0 %v718
        %724 = vmatprep.subr.bf16.mxu0 0
        %725 = vmatpush1.bf16.msra.mxu0 %v719
        %726 = vmatprep.subr.bf16.mxu0 0
        %727 = vmatpush1.bf16.msra.mxu0 0
        %728 = vmatprep.subr.bf16.mxu0 0
        %729 = vmatpush1.bf16.msra.mxu0 0
        %730 = vmatprep.subr.bf16.mxu0 0
        %731 = vmatpush1.bf16.msra.mxu0 0
        %732 = vmatprep.subr.bf16.mxu0 0
        %733 = vmatpush1.bf16.msra.mxu0 0
        %734 = vmatprep.subr.bf16.mxu0 0
        %735 = vmatpush1.bf16.msra.mxu0 0
        %736 = vmatprep.subr.bf16.mxu0 0
        %737 = vmatpush1.bf16.msra.mxu0 0
        %738 = vmatprep.subr.bf16.mxu0 0
        %739 = vmatpush1.bf16.msra.mxu0 0
        %740 = vmatprep.subr.bf16.mxu0 0
        %741 = vmatpush1.bf16.msra.mxu0 0
        %742 = vmatprep.subr.bf16.mxu0 0
        %743 = vmatpush1.bf16.msra.mxu0 0
        %744 = vmatprep.subr.bf16.mxu0 0
        %745 = vmatpush1.bf16.msra.mxu0 0
        %746 = vmatprep.subr.bf16.mxu0 0
        %747 = vmatpush1.bf16.msra.mxu0 0
        %748 = vmatprep.subr.bf16.mxu0 0
        %749 = vmatpush1.bf16.msra.mxu0 0
        %750 = vmatprep.subr.bf16.mxu0 0
        %751 = vmatpush1.bf16.msra.mxu0 0
        %752 = vmatprep.subr.bf16.mxu0 0
        %753 = vmatpush1.bf16.msra.mxu0 0
        %754 = vmatprep.mubr.bf16.mxu0 0
        %755 = vmatmul.mubr.bf16.gmra.mrb[0].mxu0 %v616
        %v756 = vpop.f32.mrb[0].mxu0
        %v757 = vadd.f32 0.0, %v756
        %v758 = vpop.f32.mrb[0].mxu0
        %v759 = vpop.f32.mrb[0].mxu0
        %v760 = vpop.f32.mrb[0].mxu0
        %761 = vdwg.mxu0
        %v766 = vunpack.c.l.b16 %v367
        %v767 = vunpack.c.l.b16 %v368
        %v768 = vunpack.c.l.b16 %v369
        %v769 = vunpack.c.l.b16 %v370
        %v770 = vpack.c.b16 %v767, %v766
        %v771 = vpack.c.b16 %v769, %v768
        %774 = vmatprep.subr.bf16.mxu0 0
        %775 = vmatpush1.bf16.msra.mxu0 %v770
        %776 = vmatprep.subr.bf16.mxu0 0
        %777 = vmatpush1.bf16.msra.mxu0 %v771
        %778 = vmatprep.subr.bf16.mxu0 0
        %779 = vmatpush1.bf16.msra.mxu0 0
        %780 = vmatprep.subr.bf16.mxu0 0
        %781 = vmatpush1.bf16.msra.mxu0 0
        %782 = vmatprep.subr.bf16.mxu0 0
        %783 = vmatpush1.bf16.msra.mxu0 0
        %784 = vmatprep.subr.bf16.mxu0 0
        %785 = vmatpush1.bf16.msra.mxu0 0
        %786 = vmatprep.subr.bf16.mxu0 0
        %787 = vmatpush1.bf16.msra.mxu0 0
        %788 = vmatprep.subr.bf16.mxu0 0
        %789 = vmatpush1.bf16.msra.mxu0 0
        %790 = vmatprep.subr.bf16.mxu0 0
        %791 = vmatpush1.bf16.msra.mxu0 0
        %792 = vmatprep.subr.bf16.mxu0 0
        %793 = vmatpush1.bf16.msra.mxu0 0
        %794 = vmatprep.subr.bf16.mxu0 0
        %795 = vmatpush1.bf16.msra.mxu0 0
        %796 = vmatprep.subr.bf16.mxu0 0
        %797 = vmatpush1.bf16.msra.mxu0 0
        %798 = vmatprep.subr.bf16.mxu0 0
        %799 = vmatpush1.bf16.msra.mxu0 0
        %800 = vmatprep.subr.bf16.mxu0 0
        %801 = vmatpush1.bf16.msra.mxu0 0
        %802 = vmatprep.subr.bf16.mxu0 0
        %803 = vmatpush1.bf16.msra.mxu0 0
        %804 = vmatprep.subr.bf16.mxu0 0
        %805 = vmatpush1.bf16.msra.mxu0 0
        %806 = vmatprep.mubr.bf16.mxu0 0
        %807 = vmatmul.mubr.bf16.gmra.mrb[0].mxu0 %v616
        %v808 = vpop.f32.mrb[0].mxu0
        %v809 = vadd.f32 0.0, %v808
        %v810 = vpop.f32.mrb[0].mxu0
        %v811 = vpop.f32.mrb[0].mxu0
        %v812 = vpop.f32.mrb[0].mxu0
        %813 = vdwg.mxu0
        %v818 = vunpack.c.l.b16 %v371
        %v819 = vunpack.c.l.b16 %v372
        %v820 = vunpack.c.l.b16 %v373
        %v821 = vunpack.c.l.b16 %v374
        %v822 = vpack.c.b16 %v819, %v818
        %v823 = vpack.c.b16 %v821, %v820
        %v827 = vsel %vm403, %v338, 0
        %829 = vmatprep.subr.bf16.mxu0 0
        %830 = vmatpush1.bf16.msra.mxu0 %v822
        %831 = vmatprep.subr.bf16.mxu0 0
        %832 = vmatpush1.bf16.msra.mxu0 %v823
        %833 = vmatprep.subr.bf16.mxu0 0
        %834 = vmatpush1.bf16.msra.mxu0 0
        %835 = vmatprep.subr.bf16.mxu0 0
        %836 = vmatpush1.bf16.msra.mxu0 0
        %837 = vmatprep.subr.bf16.mxu0 0
        %838 = vmatpush1.bf16.msra.mxu0 0
        %839 = vmatprep.subr.bf16.mxu0 0
        %840 = vmatpush1.bf16.msra.mxu0 0
        %841 = vmatprep.subr.bf16.mxu0 0
        %842 = vmatpush1.bf16.msra.mxu0 0
        %843 = vmatprep.subr.bf16.mxu0 0
        %844 = vmatpush1.bf16.msra.mxu0 0
        %845 = vmatprep.subr.bf16.mxu0 0
        %846 = vmatpush1.bf16.msra.mxu0 0
        %847 = vmatprep.subr.bf16.mxu0 0
        %848 = vmatpush1.bf16.msra.mxu0 0
        %849 = vmatprep.subr.bf16.mxu0 0
        %850 = vmatpush1.bf16.msra.mxu0 0
        %851 = vmatprep.subr.bf16.mxu0 0
        %852 = vmatpush1.bf16.msra.mxu0 0
        %853 = vmatprep.subr.bf16.mxu0 0
        %854 = vmatpush1.bf16.msra.mxu0 0
        %855 = vmatprep.subr.bf16.mxu0 0
        %856 = vmatpush1.bf16.msra.mxu0 0
        %857 = vmatprep.subr.bf16.mxu0 0
        %858 = vmatpush1.bf16.msra.mxu0 0
        %859 = vmatprep.subr.bf16.mxu0 0
        %860 = vmatpush1.bf16.msra.mxu0 0
        %861 = vmatprep.mubr.bf16.mxu0 0
        %862 = vmatmul.mubr.bf16.gmra.mrb[0].mxu0 %v827
        %v863 = vpop.f32.mrb[0].mxu0
        %v864 = vadd.f32 0.0, %v863
        %v865 = vpop.f32.mrb[0].mxu0
        %v866 = vpop.f32.mrb[0].mxu0
        %v867 = vpop.f32.mrb[0].mxu0
        %868 = vdwg.mxu0
        %v873 = vunpack.c.l.b16 %v375
        %v874 = vunpack.c.l.b16 %v376
        %v875 = vunpack.c.l.b16 %v377
        %v876 = vunpack.c.l.b16 %v378
        %v877 = vpack.c.b16 %v874, %v873
        %v878 = vpack.c.b16 %v876, %v875
        %881 = vmatprep.subr.bf16.mxu0 0
        %882 = vmatpush1.bf16.msra.mxu0 %v877
        %883 = vmatprep.subr.bf16.mxu0 0
        %884 = vmatpush1.bf16.msra.mxu0 %v878
        %885 = vmatprep.subr.bf16.mxu0 0
        %886 = vmatpush1.bf16.msra.mxu0 0
        %887 = vmatprep.subr.bf16.mxu0 0
        %888 = vmatpush1.bf16.msra.mxu0 0
        %889 = vmatprep.subr.bf16.mxu0 0
        %890 = vmatpush1.bf16.msra.mxu0 0
        %891 = vmatprep.subr.bf16.mxu0 0
        %892 = vmatpush1.bf16.msra.mxu0 0
        %893 = vmatprep.subr.bf16.mxu0 0
        %894 = vmatpush1.bf16.msra.mxu0 0
        %895 = vmatprep.subr.bf16.mxu0 0
        %896 = vmatpush1.bf16.msra.mxu0 0
        %897 = vmatprep.subr.bf16.mxu0 0
        %898 = vmatpush1.bf16.msra.mxu0 0
        %899 = vmatprep.subr.bf16.mxu0 0
        %900 = vmatpush1.bf16.msra.mxu0 0
        %901 = vmatprep.subr.bf16.mxu0 0
        %902 = vmatpush1.bf16.msra.mxu0 0
        %903 = vmatprep.subr.bf16.mxu0 0
        %904 = vmatpush1.bf16.msra.mxu0 0
        %905 = vmatprep.subr.bf16.mxu0 0
        %906 = vmatpush1.bf16.msra.mxu0 0
        %907 = vmatprep.subr.bf16.mxu0 0
        %908 = vmatpush1.bf16.msra.mxu0 0
        %909 = vmatprep.subr.bf16.mxu0 0
        %910 = vmatpush1.bf16.msra.mxu0 0
        %911 = vmatprep.subr.bf16.mxu0 0
        %912 = vmatpush1.bf16.msra.mxu0 0
        %913 = vmatprep.mubr.bf16.mxu0 0
        %914 = vmatmul.mubr.bf16.gmra.mrb[0].mxu0 %v827
        %v915 = vpop.f32.mrb[0].mxu0
        %v916 = vadd.f32 0.0, %v915
        %v917 = vpop.f32.mrb[0].mxu0
        %v918 = vpop.f32.mrb[0].mxu0
        %v919 = vpop.f32.mrb[0].mxu0
        %920 = vdwg.mxu0
        %v925 = vunpack.c.l.b16 %v379
        %v926 = vunpack.c.l.b16 %v380
        %v927 = vunpack.c.l.b16 %v381
        %v928 = vunpack.c.l.b16 %v382
        %v929 = vpack.c.b16 %v926, %v925
        %v930 = vpack.c.b16 %v928, %v927
        %933 = vmatprep.subr.bf16.mxu0 0
        %934 = vmatpush1.bf16.msra.mxu0 %v929
        %935 = vmatprep.subr.bf16.mxu0 0
        %936 = vmatpush1.bf16.msra.mxu0 %v930
        %937 = vmatprep.subr.bf16.mxu0 0
        %938 = vmatpush1.bf16.msra.mxu0 0
        %939 = vmatprep.subr.bf16.mxu0 0
        %940 = vmatpush1.bf16.msra.mxu0 0
        %941 = vmatprep.subr.bf16.mxu0 0
        %942 = vmatpush1.bf16.msra.mxu0 0
        %943 = vmatprep.subr.bf16.mxu0 0
        %944 = vmatpush1.bf16.msra.mxu0 0
        %945 = vmatprep.subr.bf16.mxu0 0
        %946 = vmatpush1.bf16.msra.mxu0 0
        %947 = vmatprep.subr.bf16.mxu0 0
        %948 = vmatpush1.bf16.msra.mxu0 0
        %949 = vmatprep.subr.bf16.mxu0 0
        %950 = vmatpush1.bf16.msra.mxu0 0
        %951 = vmatprep.subr.bf16.mxu0 0
        %952 = vmatpush1.bf16.msra.mxu0 0
        %953 = vmatprep.subr.bf16.mxu0 0
        %954 = vmatpush1.bf16.msra.mxu0 0
        %955 = vmatprep.subr.bf16.mxu0 0
        %956 = vmatpush1.bf16.msra.mxu0 0
        %957 = vmatprep.subr.bf16.mxu0 0
        %958 = vmatpush1.bf16.msra.mxu0 0
        %959 = vmatprep.subr.bf16.mxu0 0
        %960 = vmatpush1.bf16.msra.mxu0 0
        %961 = vmatprep.subr.bf16.mxu0 0
        %962 = vmatpush1.bf16.msra.mxu0 0
        %963 = vmatprep.subr.bf16.mxu0 0
        %964 = vmatpush1.bf16.msra.mxu0 0
        %965 = vmatprep.mubr.bf16.mxu0 0
        %966 = vmatmul.mubr.bf16.gmra.mrb[0].mxu0 %v827
        %v967 = vpop.f32.mrb[0].mxu0
        %v968 = vadd.f32 0.0, %v967
        %v969 = vpop.f32.mrb[0].mxu0
        %v970 = vpop.f32.mrb[0].mxu0
        %v971 = vpop.f32.mrb[0].mxu0
        %972 = vdwg.mxu0
        %v977 = vunpack.c.l.b16 %v383
        %v978 = vunpack.c.l.b16 %v384
        %v979 = vunpack.c.l.b16 %v385
        %v980 = vunpack.c.l.b16 %v386
        %v981 = vpack.c.b16 %v978, %v977
        %v982 = vpack.c.b16 %v980, %v979
        %985 = vmatprep.subr.bf16.mxu0 0
        %986 = vmatpush1.bf16.msra.mxu0 %v981
        %987 = vmatprep.subr.bf16.mxu0 0
        %988 = vmatpush1.bf16.msra.mxu0 %v982
        %989 = vmatprep.subr.bf16.mxu0 0
        %990 = vmatpush1.bf16.msra.mxu0 0
        %991 = vmatprep.subr.bf16.mxu0 0
        %992 = vmatpush1.bf16.msra.mxu0 0
        %993 = vmatprep.subr.bf16.mxu0 0
        %994 = vmatpush1.bf16.msra.mxu0 0
        %995 = vmatprep.subr.bf16.mxu0 0
        %996 = vmatpush1.bf16.msra.mxu0 0
        %997 = vmatprep.subr.bf16.mxu0 0
        %998 = vmatpush1.bf16.msra.mxu0 0
        %999 = vmatprep.subr.bf16.mxu0 0
        %1000 = vmatpush1.bf16.msra.mxu0 0
        %1001 = vmatprep.subr.bf16.mxu0 0
        %1002 = vmatpush1.bf16.msra.mxu0 0
        %1003 = vmatprep.subr.bf16.mxu0 0
        %1004 = vmatpush1.bf16.msra.mxu0 0
        %1005 = vmatprep.subr.bf16.mxu0 0
        %1006 = vmatpush1.bf16.msra.mxu0 0
        %1007 = vmatprep.subr.bf16.mxu0 0
        %1008 = vmatpush1.bf16.msra.mxu0 0
        %1009 = vmatprep.subr.bf16.mxu0 0
        %1010 = vmatpush1.bf16.msra.mxu0 0
        %1011 = vmatprep.subr.bf16.mxu0 0
        %1012 = vmatpush1.bf16.msra.mxu0 0
        %1013 = vmatprep.subr.bf16.mxu0 0
        %1014 = vmatpush1.bf16.msra.mxu0 0
        %1015 = vmatprep.subr.bf16.mxu0 0
        %1016 = vmatpush1.bf16.msra.mxu0 0
        %1017 = vmatprep.mubr.bf16.mxu0 0
        %1018 = vmatmul.mubr.bf16.gmra.mrb[0].mxu0 %v827
        %v1019 = vpop.f32.mrb[0].mxu0
        %v1020 = vadd.f32 0.0, %v1019
        %v1021 = vpop.f32.mrb[0].mxu0
        %v1022 = vpop.f32.mrb[0].mxu0
        %v1023 = vpop.f32.mrb[0].mxu0
        %1024 = vdwg.mxu0
        %v1025 = vpack.c.bf16 %v442, %v442
        %v1026 = vpack.c.bf16 %v494, %v494
        %v1027 = vpack.c.bf16 %v546, %v546
        %v1028 = vpack.c.bf16 %v598, %v598
        %v1029 = vpack.c.bf16 %v653, %v653
        %v1030 = vpack.c.bf16 %v705, %v705
        %v1031 = vpack.c.bf16 %v757, %v757
        %v1032 = vpack.c.bf16 %v809, %v809
        %vm1033 = vcmask 64512
        %v1035 = vsel %vm1033, %v1025, 0
        %v1038 = vsel %vm1033, %v1029, 0
        %1040 = vmatprep.subr.bf16.mxu0 0
        %1041 = vmatpush1.bf16.xpose.msra.mxu0 %v1038
        %1042 = vmatprep.subr.bf16.mxu0 0
        %1043 = vmatpush1.bf16.xpose.msra.mxu0 0
        %1044 = vmatprep.subr.bf16.mxu0 0
        %1045 = vmatpush1.bf16.xpose.msra.mxu0 0
        %1046 = vmatprep.subr.bf16.mxu0 0
        %1047 = vmatpush1.bf16.xpose.msra.mxu0 0
        %1048 = vmatprep.subr.bf16.mxu0 0
        %1049 = vmatpush1.bf16.xpose.msra.mxu0 0
        %1050 = vmatprep.subr.bf16.mxu0 0
        %1051 = vmatpush1.bf16.xpose.msra.mxu0 0
        %1052 = vmatprep.subr.bf16.mxu0 0
        %1053 = vmatpush1.bf16.xpose.msra.mxu0 0
        %1054 = vmatprep.subr.bf16.mxu0 0
        %1055 = vmatpush1.bf16.xpose.msra.mxu0 0
        %1056 = vmatprep.subr.bf16.mxu0 0
        %1057 = vmatpush1.bf16.xpose.msra.mxu0 0
        %1058 = vmatprep.subr.bf16.mxu0 0
        %1059 = vmatpush1.bf16.xpose.msra.mxu0 0
        %1060 = vmatprep.subr.bf16.mxu0 0
        %1061 = vmatpush1.bf16.xpose.msra.mxu0 0
        %1062 = vmatprep.subr.bf16.mxu0 0
        %1063 = vmatpush1.bf16.xpose.msra.mxu0 0
        %1064 = vmatprep.subr.bf16.mxu0 0
        %1065 = vmatpush1.bf16.xpose.msra.mxu0 0
        %1066 = vmatprep.subr.bf16.mxu0 0
        %1067 = vmatpush1.bf16.xpose.msra.mxu0 0
        %1068 = vmatprep.subr.bf16.mxu0 0
        %1069 = vmatpush1.bf16.xpose.msra.mxu0 0
        %1070 = vmatprep.subr.bf16.mxu0 0
        %1071 = vmatpush1.bf16.xpose.msra.mxu0 0
        %1072 = vmatprep.mubr.bf16.mxu0 0
        %1073 = vmatmul.mubr.bf16.gmra.mrb[0].mxu0 %v1035
        %v1074 = vpop.f32.mrb[0].mxu0
        %v1075 = vadd.f32 0.0, %v1074
        %v1076 = vpop.f32.mrb[0].mxu0
        %v1077 = vpop.f32.mrb[0].mxu0
        %v1078 = vpop.f32.mrb[0].mxu0
        %1079 = vdwg.mxu0
        %v1081 = vsel %vm1033, %v1026, 0
        %v1084 = vsel %vm1033, %v1030, 0
        %1086 = vmatprep.subr.bf16.mxu0 0
        %1087 = vmatpush1.bf16.xpose.msra.mxu0 %v1084
        %1088 = vmatprep.subr.bf16.mxu0 0
        %1089 = vmatpush1.bf16.xpose.msra.mxu0 0
        %1090 = vmatprep.subr.bf16.mxu0 0
        %1091 = vmatpush1.bf16.xpose.msra.mxu0 0
        %1092 = vmatprep.subr.bf16.mxu0 0
        %1093 = vmatpush1.bf16.xpose.msra.mxu0 0
        %1094 = vmatprep.subr.bf16.mxu0 0
        %1095 = vmatpush1.bf16.xpose.msra.mxu0 0
        %1096 = vmatprep.subr.bf16.mxu0 0
        %1097 = vmatpush1.bf16.xpose.msra.mxu0 0
        %1098 = vmatprep.subr.bf16.mxu0 0
        %1099 = vmatpush1.bf16.xpose.msra.mxu0 0
        %1100 = vmatprep.subr.bf16.mxu0 0
        %1101 = vmatpush1.bf16.xpose.msra.mxu0 0
        %1102 = vmatprep.subr.bf16.mxu0 0
        %1103 = vmatpush1.bf16.xpose.msra.mxu0 0
        %1104 = vmatprep.subr.bf16.mxu0 0
        %1105 = vmatpush1.bf16.xpose.msra.mxu0 0
        %1106 = vmatprep.subr.bf16.mxu0 0
        %1107 = vmatpush1.bf16.xpose.msra.mxu0 0
        %1108 = vmatprep.subr.bf16.mxu0 0
        %1109 = vmatpush1.bf16.xpose.msra.mxu0 0
        %1110 = vmatprep.subr.bf16.mxu0 0
        %1111 = vmatpush1.bf16.xpose.msra.mxu0 0
        %1112 = vmatprep.subr.bf16.mxu0 0
        %1113 = vmatpush1.bf16.xpose.msra.mxu0 0
        %1114 = vmatprep.subr.bf16.mxu0 0
        %1115 = vmatpush1.bf16.xpose.msra.mxu0 0
        %1116 = vmatprep.subr.bf16.mxu0 0
        %1117 = vmatpush1.bf16.xpose.msra.mxu0 0
        %1118 = vmatprep.mubr.bf16.mxu0 0
        %1119 = vmatmul.mubr.bf16.gmra.mrb[0].mxu0 %v1081
        %v1120 = vpop.f32.mrb[0].mxu0
        %v1121 = vadd.f32 0.0, %v1120
        %v1122 = vpop.f32.mrb[0].mxu0
        %v1123 = vpop.f32.mrb[0].mxu0
        %v1124 = vpop.f32.mrb[0].mxu0
        %1125 = vdwg.mxu0
        %v1127 = vsel %vm1033, %v1027, 0
        %v1130 = vsel %vm1033, %v1031, 0
        %1132 = vmatprep.subr.bf16.mxu0 0
        %1133 = vmatpush1.bf16.xpose.msra.mxu0 %v1130
        %1134 = vmatprep.subr.bf16.mxu0 0
        %1135 = vmatpush1.bf16.xpose.msra.mxu0 0
        %1136 = vmatprep.subr.bf16.mxu0 0
        %1137 = vmatpush1.bf16.xpose.msra.mxu0 0
        %1138 = vmatprep.subr.bf16.mxu0 0
        %1139 = vmatpush1.bf16.xpose.msra.mxu0 0
        %1140 = vmatprep.subr.bf16.mxu0 0
        %1141 = vmatpush1.bf16.xpose.msra.mxu0 0
        %1142 = vmatprep.subr.bf16.mxu0 0
        %1143 = vmatpush1.bf16.xpose.msra.mxu0 0
        %1144 = vmatprep.subr.bf16.mxu0 0
        %1145 = vmatpush1.bf16.xpose.msra.mxu0 0
        %1146 = vmatprep.subr.bf16.mxu0 0
        %1147 = vmatpush1.bf16.xpose.msra.mxu0 0
        %1148 = vmatprep.subr.bf16.mxu0 0
        %1149 = vmatpush1.bf16.xpose.msra.mxu0 0
        %1150 = vmatprep.subr.bf16.mxu0 0
        %1151 = vmatpush1.bf16.xpose.msra.mxu0 0
        %1152 = vmatprep.subr.bf16.mxu0 0
        %1153 = vmatpush1.bf16.xpose.msra.mxu0 0
        %1154 = vmatprep.subr.bf16.mxu0 0
        %1155 = vmatpush1.bf16.xpose.msra.mxu0 0
        %1156 = vmatprep.subr.bf16.mxu0 0
        %1157 = vmatpush1.bf16.xpose.msra.mxu0 0
        %1158 = vmatprep.subr.bf16.mxu0 0
        %1159 = vmatpush1.bf16.xpose.msra.mxu0 0
        %1160 = vmatprep.subr.bf16.mxu0 0
        %1161 = vmatpush1.bf16.xpose.msra.mxu0 0
        %1162 = vmatprep.subr.bf16.mxu0 0
        %1163 = vmatpush1.bf16.xpose.msra.mxu0 0
        %1164 = vmatprep.mubr.bf16.mxu0 0
        %1165 = vmatmul.mubr.bf16.gmra.mrb[0].mxu0 %v1127
        %v1166 = vpop.f32.mrb[0].mxu0
        %v1167 = vadd.f32 0.0, %v1166
        %v1168 = vpop.f32.mrb[0].mxu0
        %v1169 = vpop.f32.mrb[0].mxu0
        %v1170 = vpop.f32.mrb[0].mxu0
        %1171 = vdwg.mxu0
        %v1173 = vsel %vm1033, %v1028, 0
        %v1176 = vsel %vm1033, %v1032, 0
        %1178 = vmatprep.subr.bf16.mxu0 0
        %1179 = vmatpush1.bf16.xpose.msra.mxu0 %v1176
        %1180 = vmatprep.subr.bf16.mxu0 0
        %1181 = vmatpush1.bf16.xpose.msra.mxu0 0
        %1182 = vmatprep.subr.bf16.mxu0 0
        %1183 = vmatpush1.bf16.xpose.msra.mxu0 0
        %1184 = vmatprep.subr.bf16.mxu0 0
        %1185 = vmatpush1.bf16.xpose.msra.mxu0 0
        %1186 = vmatprep.subr.bf16.mxu0 0
        %1187 = vmatpush1.bf16.xpose.msra.mxu0 0
        %1188 = vmatprep.subr.bf16.mxu0 0
        %1189 = vmatpush1.bf16.xpose.msra.mxu0 0
        %1190 = vmatprep.subr.bf16.mxu0 0
        %1191 = vmatpush1.bf16.xpose.msra.mxu0 0
        %1192 = vmatprep.subr.bf16.mxu0 0
        %1193 = vmatpush1.bf16.xpose.msra.mxu0 0
        %1194 = vmatprep.subr.bf16.mxu0 0
        %1195 = vmatpush1.bf16.xpose.msra.mxu0 0
        %1196 = vmatprep.subr.bf16.mxu0 0
        %1197 = vmatpush1.bf16.xpose.msra.mxu0 0
        %1198 = vmatprep.subr.bf16.mxu0 0
        %1199 = vmatpush1.bf16.xpose.msra.mxu0 0
        %1200 = vmatprep.subr.bf16.mxu0 0
        %1201 = vmatpush1.bf16.xpose.msra.mxu0 0
        %1202 = vmatprep.subr.bf16.mxu0 0
        %1203 = vmatpush1.bf16.xpose.msra.mxu0 0
        %1204 = vmatprep.subr.bf16.mxu0 0
        %1205 = vmatpush1.bf16.xpose.msra.mxu0 0
        %1206 = vmatprep.subr.bf16.mxu0 0
        %1207 = vmatpush1.bf16.xpose.msra.mxu0 0
        %1208 = vmatprep.subr.bf16.mxu0 0
        %1209 = vmatpush1.bf16.xpose.msra.mxu0 0
        %1210 = vmatprep.mubr.bf16.mxu0 0
        %1211 = vmatmul.mubr.bf16.gmra.mrb[0].mxu0 %v1173
        %v1212 = vpop.f32.mrb[0].mxu0
        %v1213 = vadd.f32 0.0, %v1212
        %v1214 = vpop.f32.mrb[0].mxu0
        %v1215 = vpop.f32.mrb[0].mxu0
        %v1216 = vpop.f32.mrb[0].mxu0
        %1217 = vdwg.mxu0
        %v1218 = vmul.f32 %v1075, 0.35355338
        %v1219 = vmul.f32 %v1121, 0.35355338
        %v1220 = vmul.f32 %v1167, 0.35355338
        %v1221 = vmul.f32 %v1213, 0.35355338
        %v1222 = vlaneseq
        %v1223 = vshrl.u32 %v1222, 7
        %v1224 = vlaneseq
        %v1225 = vand.u32 %v1224, 127
        %vm1226 = vcmp.le.s32.totalorder %v1225, %v1223
        %v1227 = vsel %vm1226, %v1218, -1e+30
        %v1228 = vsel %vm1226, %v1219, -1e+30
        %v1229 = vsel %vm1226, %v1220, -1e+30
        %v1230 = vsel %vm1226, %v1221, -1e+30
        %v1231 = vsel %vm1033, %v1227, -inf
        %1232 = vmax.xlane.f32.xlu0 %v1231
        %v1233 = vpop.xlane.xlu0 %1232
        %v1234 = vsel %vm1033, %v1228, -inf
        %1235 = vmax.xlane.f32.xlu0 %v1234
        %v1236 = vpop.xlane.xlu0 %1235
        %v1237 = vsel %vm1033, %v1229, -inf
        %1238 = vmax.xlane.f32.xlu0 %v1237
        %v1239 = vpop.xlane.xlu0 %1238
        %v1240 = vsel %vm1033, %v1230, -inf
        %1241 = vmax.xlane.f32.xlu0 %v1240
        %v1242 = vpop.xlane.xlu0 %1241
        %v1243 = vsub.f32 %v1227, %v1233
        %v1244 = vsub.f32 %v1228, %v1236
        %v1245 = vsub.f32 %v1229, %v1239
        %v1246 = vsub.f32 %v1230, %v1242
        %v1247 = vmul.f32 %v1243, 1.442695
        %v1248 = vpow.pop %v1247
        %v1249 = vmul.f32 %v1244, 1.442695
        %v1250 = vpow.pop %v1249
        %v1251 = vmul.f32 %v1245, 1.442695
        %v1252 = vpow.pop %v1251
        %v1253 = vmul.f32 %v1246, 1.442695
        %v1254 = vpow.pop %v1253
        %v1255 = vsel %vm1033, %v1248, 0.0
        %1256 = vadd.xlane.f32.xlu0 %v1255
        %v1257 = vpop.xlane.xlu0 %1256
        %v1258 = vsel %vm1033, %v1250, 0.0
        %1259 = vadd.xlane.f32.xlu0 %v1258
        %v1260 = vpop.xlane.xlu0 %1259
        %v1261 = vsel %vm1033, %v1252, 0.0
        %1262 = vadd.xlane.f32.xlu0 %v1261
        %v1263 = vpop.xlane.xlu0 %1262
        %v1264 = vsel %vm1033, %v1254, 0.0
        %1265 = vadd.xlane.f32.xlu0 %v1264
        %v1266 = vpop.xlane.xlu0 %1265
        %v1267 = vpack.c.bf16 %v1248, %v1248
        %v1268 = vpack.c.bf16 %v1250, %v1250
        %v1269 = vpack.c.bf16 %v1252, %v1252
        %v1270 = vpack.c.bf16 %v1254, %v1254
        %v1271 = vpack.c.bf16 %v864, %v864
        %v1272 = vpack.c.bf16 %v916, %v916
        %v1273 = vpack.c.bf16 %v968, %v968
        %v1274 = vpack.c.bf16 %v1020, %v1020
        %v1276 = vsel %vm1033, %v1267, 0
        %vm1278 = vcmask 1043456
        %v1280 = vsel %vm1278, %v1271, 0
        %1282 = vmatprep.subr.bf16.mxu0 0
        %1283 = vmatpush1.bf16.msra.mxu0 %v1280
        %1284 = vmatprep.subr.bf16.mxu0 0
        %1285 = vmatpush1.bf16.msra.mxu0 0
        %1286 = vmatprep.subr.bf16.mxu0 0
        %1287 = vmatpush1.bf16.msra.mxu0 0
        %1288 = vmatprep.subr.bf16.mxu0 0
        %1289 = vmatpush1.bf16.msra.mxu0 0
        %1290 = vmatprep.subr.bf16.mxu0 0
        %1291 = vmatpush1.bf16.msra.mxu0 0
        %1292 = vmatprep.subr.bf16.mxu0 0
        %1293 = vmatpush1.bf16.msra.mxu0 0
        %1294 = vmatprep.subr.bf16.mxu0 0
        %1295 = vmatpush1.bf16.msra.mxu0 0
        %1296 = vmatprep.subr.bf16.mxu0 0
        %1297 = vmatpush1.bf16.msra.mxu0 0
        %1298 = vmatprep.subr.bf16.mxu0 0
        %1299 = vmatpush1.bf16.msra.mxu0 0
        %1300 = vmatprep.subr.bf16.mxu0 0
        %1301 = vmatpush1.bf16.msra.mxu0 0
        %1302 = vmatprep.subr.bf16.mxu0 0
        %1303 = vmatpush1.bf16.msra.mxu0 0
        %1304 = vmatprep.subr.bf16.mxu0 0
        %1305 = vmatpush1.bf16.msra.mxu0 0
        %1306 = vmatprep.subr.bf16.mxu0 0
        %1307 = vmatpush1.bf16.msra.mxu0 0
        %1308 = vmatprep.subr.bf16.mxu0 0
        %1309 = vmatpush1.bf16.msra.mxu0 0
        %1310 = vmatprep.subr.bf16.mxu0 0
        %1311 = vmatpush1.bf16.msra.mxu0 0
        %1312 = vmatprep.subr.bf16.mxu0 0
        %1313 = vmatpush1.bf16.msra.mxu0 0
        %1314 = vmatprep.mubr.bf16.mxu0 0
        %1315 = vmatmul.mubr.bf16.gmra.mrb[0].mxu0 %v1276
        %v1316 = vpop.f32.mrb[0].mxu0
        %v1317 = vadd.f32 0.0, %v1316
        %v1318 = vpop.f32.mrb[0].mxu0
        %v1319 = vpop.f32.mrb[0].mxu0
        %v1320 = vpop.f32.mrb[0].mxu0
        %1321 = vdwg.mxu0
        %v1323 = vsel %vm1033, %v1268, 0
        %v1326 = vsel %vm1278, %v1272, 0
        %1328 = vmatprep.subr.bf16.mxu0 0
        %1329 = vmatpush1.bf16.msra.mxu0 %v1326
        %1330 = vmatprep.subr.bf16.mxu0 0
        %1331 = vmatpush1.bf16.msra.mxu0 0
        %1332 = vmatprep.subr.bf16.mxu0 0
        %1333 = vmatpush1.bf16.msra.mxu0 0
        %1334 = vmatprep.subr.bf16.mxu0 0
        %1335 = vmatpush1.bf16.msra.mxu0 0
        %1336 = vmatprep.subr.bf16.mxu0 0
        %1337 = vmatpush1.bf16.msra.mxu0 0
        %1338 = vmatprep.subr.bf16.mxu0 0
        %1339 = vmatpush1.bf16.msra.mxu0 0
        %1340 = vmatprep.subr.bf16.mxu0 0
        %1341 = vmatpush1.bf16.msra.mxu0 0
        %1342 = vmatprep.subr.bf16.mxu0 0
        %1343 = vmatpush1.bf16.msra.mxu0 0
        %1344 = vmatprep.subr.bf16.mxu0 0
        %1345 = vmatpush1.bf16.msra.mxu0 0
        %1346 = vmatprep.subr.bf16.mxu0 0
        %1347 = vmatpush1.bf16.msra.mxu0 0
        %1348 = vmatprep.subr.bf16.mxu0 0
        %1349 = vmatpush1.bf16.msra.mxu0 0
        %1350 = vmatprep.subr.bf16.mxu0 0
        %1351 = vmatpush1.bf16.msra.mxu0 0
        %1352 = vmatprep.subr.bf16.mxu0 0
        %1353 = vmatpush1.bf16.msra.mxu0 0
        %1354 = vmatprep.subr.bf16.mxu0 0
        %1355 = vmatpush1.bf16.msra.mxu0 0
        %1356 = vmatprep.subr.bf16.mxu0 0
        %1357 = vmatpush1.bf16.msra.mxu0 0
        %1358 = vmatprep.subr.bf16.mxu0 0
        %1359 = vmatpush1.bf16.msra.mxu0 0
        %1360 = vmatprep.mubr.bf16.mxu0 0
        %1361 = vmatmul.mubr.bf16.gmra.mrb[0].mxu0 %v1323
        %v1362 = vpop.f32.mrb[0].mxu0
        %v1363 = vadd.f32 0.0, %v1362
        %v1364 = vpop.f32.mrb[0].mxu0
        %v1365 = vpop.f32.mrb[0].mxu0
        %v1366 = vpop.f32.mrb[0].mxu0
        %1367 = vdwg.mxu0
        %v1369 = vsel %vm1033, %v1269, 0
        %v1372 = vsel %vm1278, %v1273, 0
        %1374 = vmatprep.subr.bf16.mxu0 0
        %1375 = vmatpush1.bf16.msra.mxu0 %v1372
        %1376 = vmatprep.subr.bf16.mxu0 0
        %1377 = vmatpush1.bf16.msra.mxu0 0
        %1378 = vmatprep.subr.bf16.mxu0 0
        %1379 = vmatpush1.bf16.msra.mxu0 0
        %1380 = vmatprep.subr.bf16.mxu0 0
        %1381 = vmatpush1.bf16.msra.mxu0 0
        %1382 = vmatprep.subr.bf16.mxu0 0
        %1383 = vmatpush1.bf16.msra.mxu0 0
        %1384 = vmatprep.subr.bf16.mxu0 0
        %1385 = vmatpush1.bf16.msra.mxu0 0
        %1386 = vmatprep.subr.bf16.mxu0 0
        %1387 = vmatpush1.bf16.msra.mxu0 0
        %1388 = vmatprep.subr.bf16.mxu0 0
        %1389 = vmatpush1.bf16.msra.mxu0 0
        %1390 = vmatprep.subr.bf16.mxu0 0
        %1391 = vmatpush1.bf16.msra.mxu0 0
        %1392 = vmatprep.subr.bf16.mxu0 0
        %1393 = vmatpush1.bf16.msra.mxu0 0
        %1394 = vmatprep.subr.bf16.mxu0 0
        %1395 = vmatpush1.bf16.msra.mxu0 0
        %1396 = vmatprep.subr.bf16.mxu0 0
        %1397 = vmatpush1.bf16.msra.mxu0 0
        %1398 = vmatprep.subr.bf16.mxu0 0
        %1399 = vmatpush1.bf16.msra.mxu0 0
        %1400 = vmatprep.subr.bf16.mxu0 0
        %1401 = vmatpush1.bf16.msra.mxu0 0
        %1402 = vmatprep.subr.bf16.mxu0 0
        %1403 = vmatpush1.bf16.msra.mxu0 0
        %1404 = vmatprep.subr.bf16.mxu0 0
        %1405 = vmatpush1.bf16.msra.mxu0 0
        %1406 = vmatprep.mubr.bf16.mxu0 0
        %1407 = vmatmul.mubr.bf16.gmra.mrb[0].mxu0 %v1369
        %v1408 = vpop.f32.mrb[0].mxu0
        %v1409 = vadd.f32 0.0, %v1408
        %v1410 = vpop.f32.mrb[0].mxu0
        %v1411 = vpop.f32.mrb[0].mxu0
        %v1412 = vpop.f32.mrb[0].mxu0
        %1413 = vdwg.mxu0
        %v1415 = vsel %vm1033, %v1270, 0
        %v1418 = vsel %vm1278, %v1274, 0
        %1420 = vmatprep.subr.bf16.mxu0 0
        %1421 = vmatpush1.bf16.msra.mxu0 %v1418
        %1422 = vmatprep.subr.bf16.mxu0 0
        %1423 = vmatpush1.bf16.msra.mxu0 0
        %1424 = vmatprep.subr.bf16.mxu0 0
        %1425 = vmatpush1.bf16.msra.mxu0 0
        %1426 = vmatprep.subr.bf16.mxu0 0
        %1427 = vmatpush1.bf16.msra.mxu0 0
        %1428 = vmatprep.subr.bf16.mxu0 0
        %1429 = vmatpush1.bf16.msra.mxu0 0
        %1430 = vmatprep.subr.bf16.mxu0 0
        %1431 = vmatpush1.bf16.msra.mxu0 0
        %1432 = vmatprep.subr.bf16.mxu0 0
        %1433 = vmatpush1.bf16.msra.mxu0 0
        %1434 = vmatprep.subr.bf16.mxu0 0
        %1435 = vmatpush1.bf16.msra.mxu0 0
        %1436 = vmatprep.subr.bf16.mxu0 0
        %1437 = vmatpush1.bf16.msra.mxu0 0
        %1438 = vmatprep.subr.bf16.mxu0 0
        %1439 = vmatpush1.bf16.msra.mxu0 0
        %1440 = vmatprep.subr.bf16.mxu0 0
        %1441 = vmatpush1.bf16.msra.mxu0 0
        %1442 = vmatprep.subr.bf16.mxu0 0
        %1443 = vmatpush1.bf16.msra.mxu0 0
        %1444 = vmatprep.subr.bf16.mxu0 0
        %1445 = vmatpush1.bf16.msra.mxu0 0
        %1446 = vmatprep.subr.bf16.mxu0 0
        %1447 = vmatpush1.bf16.msra.mxu0 0
        %1448 = vmatprep.subr.bf16.mxu0 0
        %1449 = vmatpush1.bf16.msra.mxu0 0
        %1450 = vmatprep.subr.bf16.mxu0 0
        %1451 = vmatpush1.bf16.msra.mxu0 0
        %1452 = vmatprep.mubr.bf16.mxu0 0
        %1453 = vmatmul.mubr.bf16.gmra.mrb[0].mxu0 %v1415
        %v1454 = vpop.f32.mrb[0].mxu0
        %v1455 = vadd.f32 0.0, %v1454
        %v1456 = vpop.f32.mrb[0].mxu0
        %v1457 = vpop.f32.mrb[0].mxu0
        %v1458 = vpop.f32.mrb[0].mxu0
        %1459 = vdwg.mxu0
        %v1460 = vrcp.pop %v1257
        %v1461 = vrcp.pop %v1260
        %v1462 = vrcp.pop %v1263
        %v1463 = vrcp.pop %v1266
        %v1464 = vmul.f32 %v1317, %v1460
        %v1465 = vmul.f32 %v1363, %v1461
        %v1466 = vmul.f32 %v1409, %v1462
        %v1467 = vmul.f32 %v1455, %v1463
        %v1468 = vpack.c.bf16 %v1464, %v1464
        %v1469 = vpack.c.bf16 %v1465, %v1465
        %v1470 = vpack.c.bf16 %v1466, %v1466
        %v1471 = vpack.c.bf16 %v1467, %v1467
        %v1473 = vsel %vm1033, %v1468, 0
        %v1476 = vsel %vm1278, %v387, 0
        %1478 = vmatprep.subr.bf16.mxu0 0
        %1479 = vmatpush1.bf16.msra.mxu0 %v1476
        %1480 = vmatprep.subr.bf16.mxu0 0
        %1481 = vmatpush1.bf16.msra.mxu0 0
        %1482 = vmatprep.subr.bf16.mxu0 0
        %1483 = vmatpush1.bf16.msra.mxu0 0
        %1484 = vmatprep.subr.bf16.mxu0 0
        %1485 = vmatpush1.bf16.msra.mxu0 0
        %1486 = vmatprep.subr.bf16.mxu0 0
        %1487 = vmatpush1.bf16.msra.mxu0 0
        %1488 = vmatprep.subr.bf16.mxu0 0
        %1489 = vmatpush1.bf16.msra.mxu0 0
        %1490 = vmatprep.subr.bf16.mxu0 0
        %1491 = vmatpush1.bf16.msra.mxu0 0
        %1492 = vmatprep.subr.bf16.mxu0 0
        %1493 = vmatpush1.bf16.msra.mxu0 0
        %1494 = vmatprep.subr.bf16.mxu0 0
        %1495 = vmatpush1.bf16.msra.mxu0 0
        %1496 = vmatprep.subr.bf16.mxu0 0
        %1497 = vmatpush1.bf16.msra.mxu0 0
        %1498 = vmatprep.subr.bf16.mxu0 0
        %1499 = vmatpush1.bf16.msra.mxu0 0
        %1500 = vmatprep.subr.bf16.mxu0 0
        %1501 = vmatpush1.bf16.msra.mxu0 0
        %1502 = vmatprep.subr.bf16.mxu0 0
        %1503 = vmatpush1.bf16.msra.mxu0 0
        %1504 = vmatprep.subr.bf16.mxu0 0
        %1505 = vmatpush1.bf16.msra.mxu0 0
        %1506 = vmatprep.subr.bf16.mxu0 0
        %1507 = vmatpush1.bf16.msra.mxu0 0
        %1508 = vmatprep.subr.bf16.mxu0 0
        %1509 = vmatpush1.bf16.msra.mxu0 0
        %1510 = vmatprep.mubr.bf16.mxu0 0
        %1511 = vmatmul.mubr.bf16.gmra.mrb[0].mxu0 %v1473
        %v1512 = vpop.f32.mrb[0].mxu0
        %v1513 = vadd.f32 0.0, %v1512
        %v1514 = vpop.f32.mrb[0].mxu0
        %v1515 = vpop.f32.mrb[0].mxu0
        %v1516 = vpop.f32.mrb[0].mxu0
        %1517 = vdwg.mxu0
        %v1519 = vsel %vm1033, %v1469, 0
        %v1522 = vsel %vm1278, %v388, 0
        %1524 = vmatprep.subr.bf16.mxu0 0
        %1525 = vmatpush1.bf16.msra.mxu0 %v1522
        %1526 = vmatprep.subr.bf16.mxu0 0
        %1527 = vmatpush1.bf16.msra.mxu0 0
        %1528 = vmatprep.subr.bf16.mxu0 0
        %1529 = vmatpush1.bf16.msra.mxu0 0
        %1530 = vmatprep.subr.bf16.mxu0 0
        %1531 = vmatpush1.bf16.msra.mxu0 0
        %1532 = vmatprep.subr.bf16.mxu0 0
        %1533 = vmatpush1.bf16.msra.mxu0 0
        %1534 = vmatprep.subr.bf16.mxu0 0
        %1535 = vmatpush1.bf16.msra.mxu0 0
        %1536 = vmatprep.subr.bf16.mxu0 0
        %1537 = vmatpush1.bf16.msra.mxu0 0
        %1538 = vmatprep.subr.bf16.mxu0 0
        %1539 = vmatpush1.bf16.msra.mxu0 0
        %1540 = vmatprep.subr.bf16.mxu0 0
        %1541 = vmatpush1.bf16.msra.mxu0 0
        %1542 = vmatprep.subr.bf16.mxu0 0
        %1543 = vmatpush1.bf16.msra.mxu0 0
        %1544 = vmatprep.subr.bf16.mxu0 0
        %1545 = vmatpush1.bf16.msra.mxu0 0
        %1546 = vmatprep.subr.bf16.mxu0 0
        %1547 = vmatpush1.bf16.msra.mxu0 0
        %1548 = vmatprep.subr.bf16.mxu0 0
        %1549 = vmatpush1.bf16.msra.mxu0 0
        %1550 = vmatprep.subr.bf16.mxu0 0
        %1551 = vmatpush1.bf16.msra.mxu0 0
        %1552 = vmatprep.subr.bf16.mxu0 0
        %1553 = vmatpush1.bf16.msra.mxu0 0
        %1554 = vmatprep.subr.bf16.mxu0 0
        %1555 = vmatpush1.bf16.msra.mxu0 0
        %1556 = vmatprep.mubr.bf16.mxu0 0
        %1557 = vmatmul.mubr.bf16.gmra.mrb[0].mxu0 %v1519
        %v1558 = vpop.f32.mrb[0].mxu0
        %v1559 = vadd.f32 0.0, %v1558
        %v1560 = vpop.f32.mrb[0].mxu0
        %v1561 = vpop.f32.mrb[0].mxu0
        %v1562 = vpop.f32.mrb[0].mxu0
        %1563 = vdwg.mxu0
        %v1565 = vsel %vm1033, %v1470, 0
        %v1568 = vsel %vm1278, %v389, 0
        %1570 = vmatprep.subr.bf16.mxu0 0
        %1571 = vmatpush1.bf16.msra.mxu0 %v1568
        %1572 = vmatprep.subr.bf16.mxu0 0
        %1573 = vmatpush1.bf16.msra.mxu0 0
        %1574 = vmatprep.subr.bf16.mxu0 0
        %1575 = vmatpush1.bf16.msra.mxu0 0
        %1576 = vmatprep.subr.bf16.mxu0 0
        %1577 = vmatpush1.bf16.msra.mxu0 0
        %1578 = vmatprep.subr.bf16.mxu0 0
        %1579 = vmatpush1.bf16.msra.mxu0 0
        %1580 = vmatprep.subr.bf16.mxu0 0
        %1581 = vmatpush1.bf16.msra.mxu0 0
        %1582 = vmatprep.subr.bf16.mxu0 0
        %1583 = vmatpush1.bf16.msra.mxu0 0
        %1584 = vmatprep.subr.bf16.mxu0 0
        %1585 = vmatpush1.bf16.msra.mxu0 0
        %1586 = vmatprep.subr.bf16.mxu0 0
        %1587 = vmatpush1.bf16.msra.mxu0 0
        %1588 = vmatprep.subr.bf16.mxu0 0
        %1589 = vmatpush1.bf16.msra.mxu0 0
        %1590 = vmatprep.subr.bf16.mxu0 0
        %1591 = vmatpush1.bf16.msra.mxu0 0
        %1592 = vmatprep.subr.bf16.mxu0 0
        %1593 = vmatpush1.bf16.msra.mxu0 0
        %1594 = vmatprep.subr.bf16.mxu0 0
        %1595 = vmatpush1.bf16.msra.mxu0 0
        %1596 = vmatprep.subr.bf16.mxu0 0
        %1597 = vmatpush1.bf16.msra.mxu0 0
        %1598 = vmatprep.subr.bf16.mxu0 0
        %1599 = vmatpush1.bf16.msra.mxu0 0
        %1600 = vmatprep.subr.bf16.mxu0 0
        %1601 = vmatpush1.bf16.msra.mxu0 0
        %1602 = vmatprep.mubr.bf16.mxu0 0
        %1603 = vmatmul.mubr.bf16.gmra.mrb[0].mxu0 %v1565
        %v1604 = vpop.f32.mrb[0].mxu0
        %v1605 = vadd.f32 0.0, %v1604
        %v1606 = vpop.f32.mrb[0].mxu0
        %v1607 = vpop.f32.mrb[0].mxu0
        %v1608 = vpop.f32.mrb[0].mxu0
        %1609 = vdwg.mxu0
        %v1611 = vsel %vm1033, %v1471, 0
        %v1614 = vsel %vm1278, %v390, 0
        %1616 = vmatprep.subr.bf16.mxu0 0
        %1617 = vmatpush1.bf16.msra.mxu0 %v1614
        %1618 = vmatprep.subr.bf16.mxu0 0
        %1619 = vmatpush1.bf16.msra.mxu0 0
        %1620 = vmatprep.subr.bf16.mxu0 0
        %1621 = vmatpush1.bf16.msra.mxu0 0
        %1622 = vmatprep.subr.bf16.mxu0 0
        %1623 = vmatpush1.bf16.msra.mxu0 0
        %1624 = vmatprep.subr.bf16.mxu0 0
        %1625 = vmatpush1.bf16.msra.mxu0 0
        %1626 = vmatprep.subr.bf16.mxu0 0
        %1627 = vmatpush1.bf16.msra.mxu0 0
        %1628 = vmatprep.subr.bf16.mxu0 0
        %1629 = vmatpush1.bf16.msra.mxu0 0
        %1630 = vmatprep.subr.bf16.mxu0 0
        %1631 = vmatpush1.bf16.msra.mxu0 0
        %1632 = vmatprep.subr.bf16.mxu0 0
        %1633 = vmatpush1.bf16.msra.mxu0 0
        %1634 = vmatprep.subr.bf16.mxu0 0
        %1635 = vmatpush1.bf16.msra.mxu0 0
        %1636 = vmatprep.subr.bf16.mxu0 0
        %1637 = vmatpush1.bf16.msra.mxu0 0
        %1638 = vmatprep.subr.bf16.mxu0 0
        %1639 = vmatpush1.bf16.msra.mxu0 0
        %1640 = vmatprep.subr.bf16.mxu0 0
        %1641 = vmatpush1.bf16.msra.mxu0 0
        %1642 = vmatprep.subr.bf16.mxu0 0
        %1643 = vmatpush1.bf16.msra.mxu0 0
        %1644 = vmatprep.subr.bf16.mxu0 0
        %1645 = vmatpush1.bf16.msra.mxu0 0
        %1646 = vmatprep.subr.bf16.mxu0 0
        %1647 = vmatpush1.bf16.msra.mxu0 0
        %1648 = vmatprep.mubr.bf16.mxu0 0
        %1649 = vmatmul.mubr.bf16.gmra.mrb[0].mxu0 %v1611
        %v1650 = vpop.f32.mrb[0].mxu0
        %v1651 = vadd.f32 0.0, %v1650
        %v1652 = vpop.f32.mrb[0].mxu0
        %v1653 = vpop.f32.mrb[0].mxu0
        %v1654 = vpop.f32.mrb[0].mxu0
        %1655 = vdwg.mxu0
        %v1656 = vadd.f32 %v1513, %v1559
        %v1657 = vadd.f32 %v1656, %v1605
        %v1658 = vadd.f32 %v1657, %v1651
        %v1659 = vld [vmem:[%s7] sm:$0x1]
        %v1661 = vlaneseq
        %v1662 = vshrl.u32 %v1661, 7
        %v1663 = vsub.s32 0, %v1662
        %v1664 = vrot.slane %v1659, %v1663
        %v1666 = vadd.f32 %v1658, %v1664
        %1667 = vst.msk [vmem:[%s322] sm:$0xff] %vm403, %v1666
        %s1668 = sand.u32 %s213, 1
        %s1669 = scalar_lea.sflag [#allocation3], %s1668
        %s1670 = sand.u32 %s213, 1
        %s1671 = smul.addr %s1670, 8
        %s1672 = scalar_lea.vmem [#allocation2], %s1671
        // Predicated region
        $region53: #{tpu_custom_call.1} parent=51 // pred_check
          %p1673 = pneg %p223
        $region54: #{tpu_custom_call.1} parent=51 // pred_check_branch
          %1675 = sbr.rel (%p1673) target = $region56
        $region55: #{tpu_custom_call.1} parent=51 // pred_region
          %s1677 = ssub.s32 128, 128
          %1678 = vsyncadd %s1669, %s1677
          %s1679 = smul.addr %s22, 128
          %s1680 = scalar_lea.hbm %s8, %s1679
          %s1682 = sshll.u32 %s1672, 4
          %s1683 = int_to_ptr.vmem [resolvable:$true] %s1682
          %1685 = dma.vmem_to_hbm [thread:$0]  %s1683, 128, %s1680, %s1669
        $region56: #{tpu_custom_call.1} parent=51 // pred_fallthru
          _
      $region52: #{tpu_custom_call.1} parent=5 // pred_fallthru
        _
      %p1686 = scmp.le.s32.totalorder 2, %s17
      // Predicated region
      $region57: #{tpu_custom_call.1} parent=5 // pred_check
        %p1687 = pneg %p1686
      $region58: #{tpu_custom_call.1} parent=5 // pred_check_branch
        %1689 = sbr.rel (%p1687) target = $region60
      $region59: #{tpu_custom_call.1} parent=5 // pred_region
        %s1690 = ssub.s32 %s17, 2
        // Predicated region
        $region61: #{tpu_custom_call.1} parent=59 // pred_check
          %p1691 = pneg %p229
        $region62: #{tpu_custom_call.1} parent=59 // pred_check_branch
          %1693 = sbr.rel (%p1691) target = $region64
        $region63: #{tpu_custom_call.1} parent=59 // pred_region
          %s1694 = sand.u32 %s214, 1
          %s1695 = scalar_lea.sflag [#allocation3], %s1694
          %s1696 = sand.u32 %s214, 1
          %s1697 = smul.addr %s1696, 8
          %s1698 = scalar_lea.vmem [#allocation2], %s1697
          %1699 = dma.done %s1695, 128
        $region64: #{tpu_custom_call.1} parent=59 // pred_fallthru
          _
      $region60: #{tpu_custom_call.1} parent=5 // pred_fallthru
        _
    $region6: #{tpu_custom_call.1} parent=1 // loop_footer
      %s21 = sadd.s32 1, %s17
    $region7: #{tpu_custom_call.1} parent=1 // loop_footer_branch
      %16 = sbr.rel target = $region3
    $region8: #{tpu_custom_call.1} parent=1 // loop_exit
      _
    %1700 = vsyncpa [#allocation3], 1
    %s1701 = scalar_lea.sflag [#allocation3], 1
    %1702 = vsyncpa %s1701, 1

</llo_original>
